<compile_context>
chip_gen: v6e
topology: v6e:2x2x1
jax: 0.10.0
libtpu: 0.0.40
codegen_flags: <defaults>
</compile_context>

<pallas_src>
import functools

import numpy as np

import jax
import jax.numpy as jnp
from jax.experimental import pallas as pl
from jax.experimental.pallas import tpu as pltpu


NEG_INF = -1e30


def _round_up(x, m):
    return ((x + m - 1) // m) * m


def _make_kernel(seq_len, fs_max, nft_pad):
    def kernel(tok_ref, embed_ref, wtap_ref, tmask_ref, convb_ref,
               w1_ref, b1_ref, w2_ref, b2_ref, fcw_ref, fcb_ref, cmask_ref,
               feat_ref, score_ref, pred_ref):
        b = tok_ref.shape[0]
        sp = tok_ref.shape[1]               # seq_len + fs_max - 1 (time-padded)
        v1, _ = embed_ref.shape

        # ---- embedding gather as an exact one-hot matmul --------------------
        # Padded time rows carry token id -1 -> all-zero one-hot -> zero rows.
        tok = tok_ref[...]                                            # (B, Sp, 1)
        onehot = (jax.lax.broadcasted_iota(jnp.int32, (b, sp, v1), 2)
                  == tok).astype(jnp.bfloat16)                        # (B, Sp, V1)
        emb = jnp.einsum("bsv,ve->bse", onehot, embed_ref[...],
                         preferred_element_type=jnp.float32
                         ).astype(jnp.bfloat16)                       # (B, Sp, E)

        # ---- all conv banks fused: sum of tap-shifted matmuls, N = NFT_PAD --
        acc = jnp.zeros((b, seq_len, nft_pad), jnp.float32)
        for k in range(fs_max):                                       # static unroll
            acc += jnp.einsum("bse,ef->bsf",
                              emb[:, k:k + seq_len, :], wtap_ref[k],
                              preferred_element_type=jnp.float32)

        # Mask out-of-range time positions per filter bank, max-pool over time,
        # THEN bias + ReLU (exact: bias is time-constant, ReLU is monotone).
        pooled = jnp.max(acc + tmask_ref[...][None], axis=1)          # (B, NFT_PAD)
        f_pre = jnp.maximum(pooled + convb_ref[...], 0.0)

        # ---- highway ---------------------------------------------------------
        g = jnp.maximum(
            jnp.dot(f_pre, w1_ref[...], preferred_element_type=jnp.float32)
            + b1_ref[...], 0.0)
        t = jax.nn.sigmoid(
            jnp.dot(f_pre, w2_ref[...], preferred_element_type=jnp.float32)
            + b2_ref[...])
        h = t * g + (1.0 - t) * f_pre
        # TODO(synk): nn.Dropout is identity in eval mode; training-mode dropout mask not emitted.
        feat_ref[...] = h

        # ---- fc + softmax(dim=1) over the real (unpadded) classes ------------
        score = (jnp.dot(h, fcw_ref[...], preferred_element_type=jnp.float32)
                 + fcb_ref[...])
        score_ref[...] = score
        sm = score + cmask_ref[...]                # padded classes -> -1e30
        m = jnp.max(sm, axis=-1, keepdims=True)
        ex = jnp.exp(sm - m)
        pred_ref[...] = ex * pl.reciprocal(
            jnp.sum(ex, axis=-1, keepdims=True), approx=True)

    return kernel


def init_params(key, seq_len, num_classes, vocab_size, emb_dim,
                filter_sizes, num_filters):
    """Raw parameters, matching the PyTorch module's init scheme."""
    del seq_len
    keys = jax.random.split(key, 6)
    params = {}
    # nn.Embedding(vocab_size + 1, emb_dim), uniform(-1, 1)
    params["embed"] = jax.random.uniform(
        keys[0], (vocab_size + 1, emb_dim), jnp.float32, -1.0, 1.0)

    # Conv weights: truncated normal in (-0.2, 0.2), bias const 0.1.
    convs = []
    for i, (fs, nf) in enumerate(zip(filter_sizes, num_filters)):
        wk = jax.random.truncated_normal(
            jax.random.fold_in(keys[1], i), -0.2, 0.2, (fs, emb_dim, nf)
        ).astype(jnp.float32)
        bk = jnp.full((1, nf), 0.1, jnp.float32)
        convs.append((wk, bk))
    params["convs"] = convs

    nft = sum(num_filters)
    # Highway linears (stored as (in, out), i.e. transposed vs. PyTorch)
    params["hw_w1"] = (jax.random.normal(keys[2], (nft, nft)) * 0.05).astype(jnp.float32)
    params["hw_b1"] = jnp.zeros((1, nft), jnp.float32)
    params["hw_w2"] = (jax.random.normal(keys[3], (nft, nft)) * 0.05).astype(jnp.float32)
    params["hw_b2"] = jnp.zeros((1, nft), jnp.float32)
    # fc: truncated normal weight, bias const 0.1
    params["fc_w"] = jax.random.truncated_normal(
        keys[4], -0.2, 0.2, (nft, num_classes)).astype(jnp.float32)
    params["fc_b"] = jnp.full((1, num_classes), 0.1, jnp.float32)
    return params


def pack_params(params, *, seq_len, filter_sizes, num_filters, num_classes):
    """One-time repack into the fused, lane-padded kernel layout."""
    emb_dim = params["embed"].shape[1]
    nft = sum(num_filters)
    nft_pad = _round_up(max(nft, 1), 128)
    nc_pad = _round_up(max(num_classes, 1), 128)
    fs_max = max(filter_sizes)

    wtap = np.zeros((fs_max, emb_dim, nft_pad), np.float32)
    convb = np.zeros((1, nft_pad), np.float32)
    tmask = np.zeros((seq_len, nft_pad), np.float32)
    off = 0
    for (fs, nf), (w, bias) in zip(zip(filter_sizes, num_filters),
                                   params["convs"]):
        wtap[:fs, :, off:off + nf] = np.asarray(w)          # (fs, E, nf)
        convb[0, off:off + nf] = np.asarray(bias)[0]
        # valid conv positions are t in [0, seq_len - fs]; mask the rest
        tmask[seq_len - fs + 1:, off:off + nf] = NEG_INF
        off += nf

    cmask = np.zeros((1, nc_pad), np.float32)
    cmask[0, num_classes:] = NEG_INF

    def pad2(a, rows, cols):
        a = np.asarray(a)
        out = np.zeros((rows, cols), np.float32)
        out[:a.shape[0], :a.shape[1]] = a
        return out

    packed = {
        "embed": jnp.asarray(params["embed"], jnp.bfloat16),
        "w_taps": jnp.asarray(wtap, jnp.bfloat16),
        "time_mask": jnp.asarray(tmask),
        "conv_b": jnp.asarray(convb),
        "hw_w1": jnp.asarray(pad2(params["hw_w1"], nft_pad, nft_pad)),
        "hw_b1": jnp.asarray(pad2(params["hw_b1"], 1, nft_pad)),
        "hw_w2": jnp.asarray(pad2(params["hw_w2"], nft_pad, nft_pad)),
        "hw_b2": jnp.asarray(pad2(params["hw_b2"], 1, nft_pad)),
        "fc_w": jnp.asarray(pad2(params["fc_w"], nft_pad, nc_pad)),
        "fc_b": jnp.asarray(pad2(params["fc_b"], 1, nc_pad)),
        "class_mask": jnp.asarray(cmask),
    }
    return packed


@functools.partial(
    jax.jit,
    static_argnames=("seq_len", "filter_sizes", "num_filters", "num_classes"))
def discriminator_forward(packed, x, *, seq_len, filter_sizes, num_filters,
                          num_classes):
    """x: (B, seq_len) int32 token ids -> dict(pred, feature, score)."""
    batch = x.shape[0]
    nft = sum(num_filters)
    fs_max = max(filter_sizes)
    nft_pad = packed["hw_w1"].shape[0]
    nc_pad = packed["fc_w"].shape[1]
    v1, emb_dim = packed["embed"].shape

    # Time-pad tokens with -1 so every tap slice inside the kernel is in range
    # and the padded rows embed to zeros (no vocab id matches -1).
    x_pad = jnp.pad(x.astype(jnp.int32), ((0, 0), (0, fs_max - 1)),
                    constant_values=-1)
    tok3 = x_pad[:, :, None]                                  # (B, Sp, 1)

    inputs = (tok3, packed["embed"], packed["w_taps"], packed["time_mask"],
              packed["conv_b"], packed["hw_w1"], packed["hw_b1"],
              packed["hw_w2"], packed["hw_b2"], packed["fc_w"],
              packed["fc_b"], packed["class_mask"])

    sp = seq_len + fs_max - 1
    flops = int(2 * batch * (sp * v1 * emb_dim
                             + fs_max * seq_len * emb_dim * nft_pad
                             + 2 * nft_pad * nft_pad
                             + nft_pad * nc_pad))
    transcendentals = int(batch * (nft_pad + nc_pad))
    bytes_accessed = int(sum(int(np.prod(a.shape)) * a.dtype.itemsize
                             for a in inputs)
                         + batch * (nft_pad + 2 * nc_pad) * 4)

    vmem = pltpu.MemorySpace.VMEM
    feat, score, pred = pl.pallas_call(
        _make_kernel(seq_len, fs_max, nft_pad),
        out_shape=(
            jax.ShapeDtypeStruct((batch, nft_pad), jnp.float32),
            jax.ShapeDtypeStruct((batch, nc_pad), jnp.float32),
            jax.ShapeDtypeStruct((batch, nc_pad), jnp.float32),
        ),
        in_specs=[pl.BlockSpec(memory_space=vmem)] * len(inputs),
        out_specs=(pl.BlockSpec(memory_space=vmem),) * 3,
        compiler_params=pltpu.CompilerParams(
            vmem_limit_bytes=16 * 1024 * 1024),
        cost_estimate=pl.CostEstimate(flops=flops,
                                      transcendentals=transcendentals,
                                      bytes_accessed=bytes_accessed),
    )(*inputs)

    return {
        "pred": pred[:, :num_classes],
        "feature": feat[:, :nft],
        "score": score[:, :num_classes],
    }


if __name__ == "__main__":
    # Small, self-consistent hyperparameters
    SEQ_LEN = 8
    NUM_CLASSES = 2
    VOCAB_SIZE = 20
    EMB_DIM = 32
    FILTER_SIZES = (2, 3)
    NUM_FILTERS = (8, 8)
    BATCH = 4

    key = jax.random.PRNGKey(0)
    pkey, xkey = jax.random.split(key)

    raw_params = init_params(pkey, SEQ_LEN, NUM_CLASSES, VOCAB_SIZE, EMB_DIM,
                             FILTER_SIZES, NUM_FILTERS)
    packed = pack_params(raw_params, seq_len=SEQ_LEN,
                         filter_sizes=FILTER_SIZES, num_filters=NUM_FILTERS,
                         num_classes=NUM_CLASSES)
    tokens = jax.random.randint(xkey, (BATCH, SEQ_LEN), 0, VOCAB_SIZE + 1,
                                dtype=jnp.int32)

    out = discriminator_forward(
        packed, tokens,
        seq_len=SEQ_LEN, filter_sizes=FILTER_SIZES,
        num_filters=NUM_FILTERS, num_classes=NUM_CLASSES)

    jax.block_until_ready(out)

    assert out["pred"].shape == (BATCH, NUM_CLASSES)
    assert out["score"].shape == (BATCH, NUM_CLASSES)
    assert out["feature"].shape == (BATCH, sum(NUM_FILTERS))
    # softmax rows should sum to ~1 (approx reciprocal -> slightly looser tol)
    assert bool(jnp.allclose(jnp.sum(out["pred"], axis=-1), 1.0, atol=5e-3))
    assert bool(jnp.all(jnp.isfinite(out["feature"])))

    print("KERNEL_OK")
</pallas_src>

<mosaic_0001>
module attributes {stable_mosaic.version = 11 : i64} {
  func.func @kernel(%arg0: memref<4x10x1xi32, #tpu.memory_space<vmem>>, %arg1: memref<21x32xbf16, #tpu.memory_space<vmem>>, %arg2: memref<3x32x128xbf16, #tpu.memory_space<vmem>>, %arg3: memref<8x128xf32, #tpu.memory_space<vmem>>, %arg4: memref<1x128xf32, #tpu.memory_space<vmem>>, %arg5: memref<128x128xf32, #tpu.memory_space<vmem>>, %arg6: memref<1x128xf32, #tpu.memory_space<vmem>>, %arg7: memref<128x128xf32, #tpu.memory_space<vmem>>, %arg8: memref<1x128xf32, #tpu.memory_space<vmem>>, %arg9: memref<128x128xf32, #tpu.memory_space<vmem>>, %arg10: memref<1x128xf32, #tpu.memory_space<vmem>>, %arg11: memref<1x128xf32, #tpu.memory_space<vmem>>, %arg12: memref<4x128xf32, #tpu.memory_space<vmem>>, %arg13: memref<4x128xf32, #tpu.memory_space<vmem>>, %arg14: memref<4x128xf32, #tpu.memory_space<vmem>>) attributes {dimension_semantics = [], scalar_prefetch = 0 : i64, scratch_operands = 0 : i64, tpu.core_type = #tpu.core_type<tc>} {
    %c0 = arith.constant 0 : index
    %c0_0 = arith.constant 0 : index
    %c0_1 = arith.constant 0 : index
    %0 = vector.load %arg0[%c0, %c0_0, %c0_1] : memref<4x10x1xi32, #tpu.memory_space<vmem>>, vector<4x10x1xi32>
    %1 = tpu.iota {dimensions = array<i32: 2>} : vector<4x10x21xi32>
    %2 = vector.broadcast %0 : vector<4x10x1xi32> to vector<4x10x21xi32>
    %3 = arith.cmpi eq, %1, %2 : vector<4x10x21xi32>
    %4 = arith.extui %3 : vector<4x10x21xi1> to vector<4x10x21xi32>
    %5 = arith.sitofp %4 : vector<4x10x21xi32> to vector<4x10x21xf32>
    %6 = arith.truncf %5 : vector<4x10x21xf32> to vector<4x10x21xbf16>
    %c0_2 = arith.constant 0 : index
    %c0_3 = arith.constant 0 : index
    %7 = vector.load %arg1[%c0_2, %c0_3] : memref<21x32xbf16, #tpu.memory_space<vmem>>, vector<21x32xbf16>
    "tpu.trace_start"() <{level = 10 : i32, message = "bsv,ve->bse"}> : () -> ()
    %cst = arith.constant dense<0.000000e+00> : vector<4x10x32xf32>
    %8 = tpu.matmul %6, %7, %cst {dimension_numbers = #tpu.dot_dimension_numbers<[2], [0], [0, 1], [1], [0, 0, 0, 1, 1, 1], [], []>} : vector<4x10x21xbf16>, vector<21x32xbf16>, vector<4x10x32xf32> -> vector<4x10x32xf32>
    "tpu.trace_stop"() : () -> ()
    %9 = arith.truncf %8 : vector<4x10x32xf32> to vector<4x10x32xbf16>
    %cst_4 = arith.constant 0.000000e+00 : f32
    %10 = vector.broadcast %cst_4 : f32 to vector<4x8x128xf32>
    %11 = vector.extract_strided_slice %9 {offsets = [0, 0, 0], sizes = [4, 8, 32], strides = [1, 1, 1]} : vector<4x10x32xbf16> to vector<4x8x32xbf16>
    %c0_5 = arith.constant 0 : index
    %c0_6 = arith.constant 0 : index
    %c0_7 = arith.constant 0 : index
    %12 = vector.load %arg2[%c0_5, %c0_6, %c0_7] : memref<3x32x128xbf16, #tpu.memory_space<vmem>>, vector<1x32x128xbf16>
    %13 = vector.shape_cast %12 : vector<1x32x128xbf16> to vector<32x128xbf16>
    "tpu.trace_start"() <{level = 10 : i32, message = "bse,ef->bsf"}> : () -> ()
    %cst_8 = arith.constant dense<0.000000e+00> : vector<4x8x128xf32>
    %14 = tpu.matmul %11, %13, %cst_8 {dimension_numbers = #tpu.dot_dimension_numbers<[2], [0], [0, 1], [1], [0, 0, 0, 1, 1, 1], [], []>} : vector<4x8x32xbf16>, vector<32x128xbf16>, vector<4x8x128xf32> -> vector<4x8x128xf32>
    "tpu.trace_stop"() : () -> ()
    %15 = arith.addf %10, %14 : vector<4x8x128xf32>
    %16 = vector.extract_strided_slice %9 {offsets = [0, 1, 0], sizes = [4, 8, 32], strides = [1, 1, 1]} : vector<4x10x32xbf16> to vector<4x8x32xbf16>
    %c1 = arith.constant 1 : index
    %c0_9 = arith.constant 0 : index
    %c0_10 = arith.constant 0 : index
    %17 = vector.load %arg2[%c1, %c0_9, %c0_10] : memref<3x32x128xbf16, #tpu.memory_space<vmem>>, vector<1x32x128xbf16>
    %18 = vector.shape_cast %17 : vector<1x32x128xbf16> to vector<32x128xbf16>
    "tpu.trace_start"() <{level = 10 : i32, message = "bse,ef->bsf"}> : () -> ()
    %cst_11 = arith.constant dense<0.000000e+00> : vector<4x8x128xf32>
    %19 = tpu.matmul %16, %18, %cst_11 {dimension_numbers = #tpu.dot_dimension_numbers<[2], [0], [0, 1], [1], [0, 0, 0, 1, 1, 1], [], []>} : vector<4x8x32xbf16>, vector<32x128xbf16>, vector<4x8x128xf32> -> vector<4x8x128xf32>
    "tpu.trace_stop"() : () -> ()
    %20 = arith.addf %15, %19 : vector<4x8x128xf32>
    %21 = vector.extract_strided_slice %9 {offsets = [0, 2, 0], sizes = [4, 8, 32], strides = [1, 1, 1]} : vector<4x10x32xbf16> to vector<4x8x32xbf16>
    %c2 = arith.constant 2 : index
    %c0_12 = arith.constant 0 : index
    %c0_13 = arith.constant 0 : index
    %22 = vector.load %arg2[%c2, %c0_12, %c0_13] : memref<3x32x128xbf16, #tpu.memory_space<vmem>>, vector<1x32x128xbf16>
    %23 = vector.shape_cast %22 : vector<1x32x128xbf16> to vector<32x128xbf16>
    "tpu.trace_start"() <{level = 10 : i32, message = "bse,ef->bsf"}> : () -> ()
    %cst_14 = arith.constant dense<0.000000e+00> : vector<4x8x128xf32>
    %24 = tpu.matmul %21, %23, %cst_14 {dimension_numbers = #tpu.dot_dimension_numbers<[2], [0], [0, 1], [1], [0, 0, 0, 1, 1, 1], [], []>} : vector<4x8x32xbf16>, vector<32x128xbf16>, vector<4x8x128xf32> -> vector<4x8x128xf32>
    "tpu.trace_stop"() : () -> ()
    %25 = arith.addf %20, %24 : vector<4x8x128xf32>
    %c0_15 = arith.constant 0 : index
    %c0_16 = arith.constant 0 : index
    %26 = vector.load %arg3[%c0_15, %c0_16] : memref<8x128xf32, #tpu.memory_space<vmem>>, vector<8x128xf32>
    %27 = vector.shape_cast %26 : vector<8x128xf32> to vector<1x8x128xf32>
    %28 = vector.broadcast %27 : vector<1x8x128xf32> to vector<4x8x128xf32>
    %29 = arith.addf %25, %28 : vector<4x8x128xf32>
    %cst_17 = arith.constant dense<0xFF800000> : vector<4x128xf32>
    %30 = vector.multi_reduction <maximumf>, %29, %cst_17 [1] : vector<4x8x128xf32> to vector<4x128xf32>
    %c0_18 = arith.constant 0 : index
    %c0_19 = arith.constant 0 : index
    %31 = vector.load %arg4[%c0_18, %c0_19] : memref<1x128xf32, #tpu.memory_space<vmem>>, vector<1x128xf32>
    %32 = vector.broadcast %31 : vector<1x128xf32> to vector<4x128xf32>
    %33 = arith.addf %30, %32 : vector<4x128xf32>
    %cst_20 = arith.constant 0.000000e+00 : f32
    %34 = vector.broadcast %cst_20 : f32 to vector<4x128xf32>
    %35 = arith.maximumf %33, %34 : vector<4x128xf32>
    %c0_21 = arith.constant 0 : index
    %c0_22 = arith.constant 0 : index
    %36 = vector.load %arg5[%c0_21, %c0_22] : memref<128x128xf32, #tpu.memory_space<vmem>>, vector<128x128xf32>
    %cst_23 = arith.constant dense<0.000000e+00> : vector<4x128xf32>
    %37 = tpu.matmul %35, %36, %cst_23 {dimension_numbers = #tpu.dot_dimension_numbers<[1], [0], [0], [1], [0, 0, 1, 1], [], []>} : vector<4x128xf32>, vector<128x128xf32>, vector<4x128xf32> -> vector<4x128xf32>
    %c0_24 = arith.constant 0 : index
    %c0_25 = arith.constant 0 : index
    %38 = vector.load %arg6[%c0_24, %c0_25] : memref<1x128xf32, #tpu.memory_space<vmem>>, vector<1x128xf32>
    %39 = vector.broadcast %38 : vector<1x128xf32> to vector<4x128xf32>
    %40 = arith.addf %37, %39 : vector<4x128xf32>
    %cst_26 = arith.constant 0.000000e+00 : f32
    %41 = vector.broadcast %cst_26 : f32 to vector<4x128xf32>
    %42 = arith.maximumf %40, %41 : vector<4x128xf32>
    %c0_27 = arith.constant 0 : index
    %c0_28 = arith.constant 0 : index
    %43 = vector.load %arg7[%c0_27, %c0_28] : memref<128x128xf32, #tpu.memory_space<vmem>>, vector<128x128xf32>
    %cst_29 = arith.constant dense<0.000000e+00> : vector<4x128xf32>
    %44 = tpu.matmul %35, %43, %cst_29 {dimension_numbers = #tpu.dot_dimension_numbers<[1], [0], [0], [1], [0, 0, 1, 1], [], []>} : vector<4x128xf32>, vector<128x128xf32>, vector<4x128xf32> -> vector<4x128xf32>
    %c0_30 = arith.constant 0 : index
    %c0_31 = arith.constant 0 : index
    %45 = vector.load %arg8[%c0_30, %c0_31] : memref<1x128xf32, #tpu.memory_space<vmem>>, vector<1x128xf32>
    %46 = vector.broadcast %45 : vector<1x128xf32> to vector<4x128xf32>
    %47 = arith.addf %44, %46 : vector<4x128xf32>
    %48 = arith.negf %47 : vector<4x128xf32>
    %49 = math.exp %48 : vector<4x128xf32>
    %cst_32 = arith.constant 1.000000e+00 : f32
    %50 = vector.broadcast %cst_32 : f32 to vector<4x128xf32>
    %51 = arith.addf %50, %49 : vector<4x128xf32>
    %52 = arith.divf %50, %51 : vector<4x128xf32>
    %53 = arith.mulf %52, %42 : vector<4x128xf32>
    %cst_33 = arith.constant 1.000000e+00 : f32
    %54 = vector.broadcast %cst_33 : f32 to vector<4x128xf32>
    %55 = arith.subf %54, %52 : vector<4x128xf32>
    %56 = arith.mulf %55, %35 : vector<4x128xf32>
    %57 = arith.addf %53, %56 : vector<4x128xf32>
    %c0_34 = arith.constant 0 : index
    %c0_35 = arith.constant 0 : index
    %58 = vector.load %arg12[%c0_34, %c0_35] : memref<4x128xf32, #tpu.memory_space<vmem>>, vector<4x128xf32>
    tpu.vector_store %arg12[%c0_34, %c0_35], %57 {strides = array<i32>} : memref<4x128xf32, #tpu.memory_space<vmem>>, vector<4x128xf32>,
    %c0_36 = arith.constant 0 : index
    %c0_37 = arith.constant 0 : index
    %59 = vector.load %arg9[%c0_36, %c0_37] : memref<128x128xf32, #tpu.memory_space<vmem>>, vector<128x128xf32>
    %cst_38 = arith.constant dense<0.000000e+00> : vector<4x128xf32>
    %60 = tpu.matmul %57, %59, %cst_38 {dimension_numbers = #tpu.dot_dimension_numbers<[1], [0], [0], [1], [0, 0, 1, 1], [], []>} : vector<4x128xf32>, vector<128x128xf32>, vector<4x128xf32> -> vector<4x128xf32>
    %c0_39 = arith.constant 0 : index
    %c0_40 = arith.constant 0 : index
    %61 = vector.load %arg10[%c0_39, %c0_40] : memref<1x128xf32, #tpu.memory_space<vmem>>, vector<1x128xf32>
    %62 = vector.broadcast %61 : vector<1x128xf32> to vector<4x128xf32>
    %63 = arith.addf %60, %62 : vector<4x128xf32>
    %c0_41 = arith.constant 0 : index
    %c0_42 = arith.constant 0 : index
    %64 = vector.load %arg13[%c0_41, %c0_42] : memref<4x128xf32, #tpu.memory_space<vmem>>, vector<4x128xf32>
    tpu.vector_store %arg13[%c0_41, %c0_42], %63 {strides = array<i32>} : memref<4x128xf32, #tpu.memory_space<vmem>>, vector<4x128xf32>,
    %c0_43 = arith.constant 0 : index
    %c0_44 = arith.constant 0 : index
    %65 = vector.load %arg11[%c0_43, %c0_44] : memref<1x128xf32, #tpu.memory_space<vmem>>, vector<1x128xf32>
    %66 = vector.broadcast %65 : vector<1x128xf32> to vector<4x128xf32>
    %67 = arith.addf %63, %66 : vector<4x128xf32>
    %cst_45 = arith.constant dense<0xFF800000> : vector<4xf32>
    %68 = vector.multi_reduction <maximumf>, %67, %cst_45 [1] : vector<4x128xf32> to vector<4xf32>
    %69 = vector.shape_cast %68 : vector<4xf32> to vector<4x1xf32>
    %70 = vector.broadcast %69 : vector<4x1xf32> to vector<4x128xf32>
    %71 = arith.subf %67, %70 : vector<4x128xf32>
    %72 = math.exp %71 : vector<4x128xf32>
    %cst_46 = arith.constant dense<0.000000e+00> : vector<4xf32>
    %73 = vector.multi_reduction <add>, %72, %cst_46 [1] : vector<4x128xf32> to vector<4xf32>
    %74 = vector.shape_cast %73 : vector<4xf32> to vector<4x1xf32>
    %75 = tpu.reciprocal %74 {approx = true} : vector<4x1xf32> -> vector<4x1xf32>
    %76 = vector.broadcast %75 : vector<4x1xf32> to vector<4x128xf32>
    %77 = arith.mulf %72, %76 : vector<4x128xf32>
    %c0_47 = arith.constant 0 : index
    %c0_48 = arith.constant 0 : index
    %78 = vector.load %arg14[%c0_47, %c0_48] : memref<4x128xf32, #tpu.memory_space<vmem>>, vector<4x128xf32>
    tpu.vector_store %arg14[%c0_47, %c0_48], %77 {strides = array<i32>} : memref<4x128xf32, #tpu.memory_space<vmem>>, vector<4x128xf32>,
    return
  }
}

</mosaic_0001>

<llo_original>
// kernel: discriminator_forward.1
$region0: #{discriminator_forward.1}
  #allocation0 [shape = 'u32[]', space=smem, size = 0x4, offset = 0x4, fixed_abs, tag = 'smem constant byte address 0x4 - core index']
  #allocation1 [shape = 'u32[144,128]{1,0:T(1,128)}', space=vmem, size = 0x12000, scoped, tag = 'internal scratch']
  %s0 = inlined_call_operand.vmem [shape: s32[4,10,1], index: 0, kind: input, shape index: {}]
  %s1 = inlined_call_operand.vmem [shape: bf16[21,32], index: 1, kind: input, shape index: {}]
  %s2 = inlined_call_operand.vmem [shape: bf16[3,32,128], index: 2, kind: input, shape index: {}]
  %s3 = inlined_call_operand.vmem [shape: f32[8,128], index: 3, kind: input, shape index: {}]
  %s4 = inlined_call_operand.vmem [shape: f32[1,128], index: 4, kind: input, shape index: {}]
  %s5 = inlined_call_operand.hbm [shape: f32[128,128], index: 5, kind: input, shape index: {}]
  %s6 = inlined_call_operand.vmem [shape: f32[1,128], index: 6, kind: input, shape index: {}]
  %s7 = inlined_call_operand.hbm [shape: f32[128,128], index: 7, kind: input, shape index: {}]
  %s8 = inlined_call_operand.vmem [shape: f32[1,128], index: 8, kind: input, shape index: {}]
  %s9 = inlined_call_operand.hbm [shape: f32[128,128], index: 9, kind: input, shape index: {}]
  %s10 = inlined_call_operand.vmem [shape: f32[1,128], index: 10, kind: input, shape index: {}]
  %s11 = inlined_call_operand.vmem [shape: f32[1,128], index: 11, kind: input, shape index: {}]
  %s12 = inlined_call_operand.hbm [shape: f32[4,128], index: 12, kind: output, shape index: {0}]
  %s13 = inlined_call_operand.vmem [shape: f32[4,128], index: 13, kind: output, shape index: {1}]
  %s14 = inlined_call_operand.vmem [shape: f32[4,128], index: 14, kind: output, shape index: {2}]
  %15 = xla_tuple %s12, %s13, %s14
  %s16 = sld [smem:[#allocation0]]
  $region86: #{discriminator_forward.1} parent=0
    _
  %s18 = ssub.s32 1, %s16
  %s19 = scalar_select 0, %s18, %s16
  $region1: #{discriminator_forward.1} parent=0
    #allocation2 [shape = 'u8[65536]{0}', space=vmem, size = 0x10000, scoped, tag = 'input window, operand 5, single buffered']
    #allocation3 [shape = 's32[1]{0}', space=sflag, size = 0x4, scoped, tag = 'scoped memory for discriminator_forward.1']
    #allocation4 [shape = 's32[1]{0}', space=sflag, size = 0x4, scoped, tag = 'scoped memory for discriminator_forward.1']
    #allocation5 [shape = 'u8[65536]{0}', space=vmem, size = 0x10000, scoped, tag = 'input window, operand 7, single buffered']
    #allocation6 [shape = 's32[1]{0}', space=sflag, size = 0x4, scoped, tag = 'scoped memory for discriminator_forward.1']
    #allocation7 [shape = 'u8[65536]{0}', space=vmem, size = 0x10000, scoped, tag = 'input window, operand 9, single buffered']
    #allocation8 [shape = 'u8[2048]{0}', space=vmem, size = 0x800, scoped, tag = 'output window, operand 0, single buffered']
    %20 = vsyncpa [#allocation3], 0
    %21 = vsyncpa [#allocation6], 0
    %22 = vsyncpa [#allocation4], 0
    // Predicated region
    $region2: #{discriminator_forward.1} parent=1 // pred_check
      _
    $region3: #{discriminator_forward.1} parent=1 // pred_check_branch
      %24 = sbr.rel (0) target = $region5
    $region4: #{discriminator_forward.1} parent=1 // pred_region
      _
    $region5: #{discriminator_forward.1} parent=1 // pred_fallthru
      _
    // Predicated region
    $region6: #{discriminator_forward.1} parent=1 // pred_check
      _
    $region7: #{discriminator_forward.1} parent=1 // pred_check_branch
      %26 = sbr.rel (0) target = $region9
    $region8: #{discriminator_forward.1} parent=1 // pred_region
      _
    $region9: #{discriminator_forward.1} parent=1 // pred_fallthru
      _
    // Predicated region
    $region10: #{discriminator_forward.1} parent=1 // pred_check
      _
    $region11: #{discriminator_forward.1} parent=1 // pred_check_branch
      %28 = sbr.rel (0) target = $region13
    $region12: #{discriminator_forward.1} parent=1 // pred_region
      _
    $region13: #{discriminator_forward.1} parent=1 // pred_fallthru
      _
    // Predicated region
    $region14: #{discriminator_forward.1} parent=1 // pred_check
      _
    $region15: #{discriminator_forward.1} parent=1 // pred_check_branch
      %30 = sbr.rel (0) target = $region17
    $region16: #{discriminator_forward.1} parent=1 // pred_region
      _
    $region17: #{discriminator_forward.1} parent=1 // pred_fallthru
      _
    // Predicated region
    $region18: #{discriminator_forward.1} parent=1 // pred_check
      _
    $region19: #{discriminator_forward.1} parent=1 // pred_check_branch
      %32 = sbr.rel (0) target = $region21
    $region20: #{discriminator_forward.1} parent=1 // pred_region
      _
    $region21: #{discriminator_forward.1} parent=1 // pred_fallthru
      _
    // Predicated region
    $region22: #{discriminator_forward.1} parent=1 // pred_check
      _
    $region23: #{discriminator_forward.1} parent=1 // pred_check_branch
      %34 = sbr.rel (0) target = $region25
    $region24: #{discriminator_forward.1} parent=1 // pred_region
      %s36 = ssub.s32 2048, 2048
      %37 = vsyncadd [#allocation3], %s36
      %s38 = sshll.u32 [#allocation2], 4
      %s39 = int_to_ptr.vmem [resolvable:$true] %s38
      %44 = dma.hbm_to_vmem [thread:$0]  %s5, 2048, %s39, [#allocation3], 128, 128, 8
    $region25: #{discriminator_forward.1} parent=1 // pred_fallthru
      _
    // Predicated region
    $region26: #{discriminator_forward.1} parent=1 // pred_check
      _
    $region27: #{discriminator_forward.1} parent=1 // pred_check_branch
      %46 = sbr.rel (0) target = $region29
    $region28: #{discriminator_forward.1} parent=1 // pred_region
      _
    $region29: #{discriminator_forward.1} parent=1 // pred_fallthru
      _
    // Predicated region
    $region30: #{discriminator_forward.1} parent=1 // pred_check
      _
    $region31: #{discriminator_forward.1} parent=1 // pred_check_branch
      %48 = sbr.rel (0) target = $region33
    $region32: #{discriminator_forward.1} parent=1 // pred_region
      %s50 = ssub.s32 2048, 2048
      %51 = vsyncadd [#allocation6], %s50
      %s52 = sshll.u32 [#allocation5], 4
      %s53 = int_to_ptr.vmem [resolvable:$true] %s52
      %58 = dma.hbm_to_vmem [thread:$0]  %s7, 2048, %s53, [#allocation6], 128, 128, 8
    $region33: #{discriminator_forward.1} parent=1 // pred_fallthru
      _
    // Predicated region
    $region34: #{discriminator_forward.1} parent=1 // pred_check
      _
    $region35: #{discriminator_forward.1} parent=1 // pred_check_branch
      %60 = sbr.rel (0) target = $region37
    $region36: #{discriminator_forward.1} parent=1 // pred_region
      _
    $region37: #{discriminator_forward.1} parent=1 // pred_fallthru
      _
    // Predicated region
    $region38: #{discriminator_forward.1} parent=1 // pred_check
      _
    $region39: #{discriminator_forward.1} parent=1 // pred_check_branch
      %62 = sbr.rel (0) target = $region41
    $region40: #{discriminator_forward.1} parent=1 // pred_region
      %s64 = ssub.s32 2048, 2048
      %65 = vsyncadd [#allocation6], %s64
      %s66 = sshll.u32 [#allocation7], 4
      %s67 = int_to_ptr.vmem [resolvable:$true] %s66
      %72 = dma.hbm_to_vmem [thread:$0]  %s9, 2048, %s67, [#allocation6], 128, 128, 8
    $region41: #{discriminator_forward.1} parent=1 // pred_fallthru
      _
    // Predicated region
    $region42: #{discriminator_forward.1} parent=1 // pred_check
      _
    $region43: #{discriminator_forward.1} parent=1 // pred_check_branch
      %74 = sbr.rel (0) target = $region45
    $region44: #{discriminator_forward.1} parent=1 // pred_region
      _
    $region45: #{discriminator_forward.1} parent=1 // pred_fallthru
      _
    // Predicated region
    $region46: #{discriminator_forward.1} parent=1 // pred_check
      _
    $region47: #{discriminator_forward.1} parent=1 // pred_check_branch
      %76 = sbr.rel (0) target = $region49
    $region48: #{discriminator_forward.1} parent=1 // pred_region
      _
    $region49: #{discriminator_forward.1} parent=1 // pred_fallthru
      _
    // Predicated region
    $region50: #{discriminator_forward.1} parent=1 // pred_check
      _
    $region51: #{discriminator_forward.1} parent=1 // pred_check_branch
      %78 = sbr.rel (0) target = $region53
    $region52: #{discriminator_forward.1} parent=1 // pred_region
      %79 = dma.done [#allocation3], 2048
    $region53: #{discriminator_forward.1} parent=1 // pred_fallthru
      _
    // Predicated region
    $region54: #{discriminator_forward.1} parent=1 // pred_check
      _
    $region55: #{discriminator_forward.1} parent=1 // pred_check_branch
      %81 = sbr.rel (0) target = $region57
    $region56: #{discriminator_forward.1} parent=1 // pred_region
      %82 = dma.done [#allocation6], 2048
    $region57: #{discriminator_forward.1} parent=1 // pred_fallthru
      _
    // Predicated region
    $region58: #{discriminator_forward.1} parent=1 // pred_check
      _
    $region59: #{discriminator_forward.1} parent=1 // pred_check_branch
      %84 = sbr.rel (0) target = $region61
    $region60: #{discriminator_forward.1} parent=1 // pred_region
      %85 = dma.done [#allocation6], 2048
    $region61: #{discriminator_forward.1} parent=1 // pred_fallthru
      _
    %v87 = vld [vmem:[%s0] sm:$0xff]
    %v88 = vld [vmem:[%s0 + $0x8] sm:$0x3]
    %v89 = vld [vmem:[%s0 + $0x10] sm:$0xff]
    %v90 = vld [vmem:[%s0 + $0x18] sm:$0x3]
    %v91 = vld [vmem:[%s0 + $0x20] sm:$0xff]
    %v92 = vld [vmem:[%s0 + $0x28] sm:$0x3]
    %v93 = vld [vmem:[%s0 + $0x30] sm:$0xff]
    %v94 = vld [vmem:[%s0 + $0x38] sm:$0x3]
    %v95 = vlaneseq
    %v96 = vand.u32 %v95, 127
    %97 = vset.pattern.permute.xlu0 0
    %98 = vperm.xlu0 %97, %v87
    %v99 = vpop.permute.xlu0 %98
    %100 = vset.pattern.permute.xlu0 0
    %101 = vperm.xlu0 %100, %v88
    %v102 = vpop.permute.xlu0 %101
    %103 = vset.pattern.permute.xlu0 0
    %104 = vperm.xlu0 %103, %v89
    %v105 = vpop.permute.xlu0 %104
    %106 = vset.pattern.permute.xlu0 0
    %107 = vperm.xlu0 %106, %v90
    %v108 = vpop.permute.xlu0 %107
    %109 = vset.pattern.permute.xlu0 0
    %110 = vperm.xlu0 %109, %v91
    %v111 = vpop.permute.xlu0 %110
    %112 = vset.pattern.permute.xlu0 0
    %113 = vperm.xlu0 %112, %v92
    %v114 = vpop.permute.xlu0 %113
    %115 = vset.pattern.permute.xlu0 0
    %116 = vperm.xlu0 %115, %v93
    %v117 = vpop.permute.xlu0 %116
    %118 = vset.pattern.permute.xlu0 0
    %119 = vperm.xlu0 %118, %v94
    %v120 = vpop.permute.xlu0 %119
    %vm121 = vcmp.eq.s32.totalorder %v96, %v99
    %vm122 = vcmp.eq.s32.totalorder %v96, %v102
    %vm123 = vcmp.eq.s32.totalorder %v96, %v105
    %vm124 = vcmp.eq.s32.totalorder %v96, %v108
    %vm125 = vcmp.eq.s32.totalorder %v96, %v111
    %vm126 = vcmp.eq.s32.totalorder %v96, %v114
    %vm127 = vcmp.eq.s32.totalorder %v96, %v117
    %vm128 = vcmp.eq.s32.totalorder %v96, %v120
    %v129 = vsel %vm121, 1, 0
    %v130 = vsel %vm122, 1, 0
    %v131 = vsel %vm123, 1, 0
    %v132 = vsel %vm124, 1, 0
    %v133 = vsel %vm125, 1, 0
    %v134 = vsel %vm126, 1, 0
    %v135 = vsel %vm127, 1, 0
    %v136 = vsel %vm128, 1, 0
    %v137 = vcvt.s32.f32 %v129
    %v138 = vcvt.s32.f32 %v130
    %v139 = vcvt.s32.f32 %v131
    %v140 = vcvt.s32.f32 %v132
    %v141 = vcvt.s32.f32 %v133
    %v142 = vcvt.s32.f32 %v134
    %v143 = vcvt.s32.f32 %v135
    %v144 = vcvt.s32.f32 %v136
    %v145 = vpack.c.bf16 %v138, %v137
    %v146 = vpack.c.bf16 %v140, %v139
    %v147 = vpack.c.bf16 %v142, %v141
    %v148 = vpack.c.bf16 %v144, %v143
    %v149 = vld [vmem:[%s1] sm:$0xf]
    %v150 = vld [vmem:[%s1 + $0x4] sm:$0xf]
    %v151 = vld [vmem:[%s1 + $0x8] sm:$0x7]
    %v156 = vcombine.high %v145, %v145
    %v158 = vunpack.c.l.s4 1966171168
    %v159 = vunpack.c.0.s8 %v158
    %v160 = vlaneseq
    %v161 = vshrl.u32 %v160, 7
    %v162 = vsub.s32 %v159, %v161
    %v163 = vrot.slane %v145, %v162
    %v165 = vunpack.c.l.s4 1966171168
    %v166 = vunpack.c.0.s8 %v165
    %v167 = vlaneseq
    %v168 = vshrl.u32 %v167, 7
    %v169 = vsub.s32 %v166, %v168
    %v170 = vrot.slane %v156, %v169
    %v171 = vcombine.high %v163, %v163
    %v173 = vunpack.c.l.s4 1966171168
    %v174 = vunpack.c.0.s8 %v173
    %v175 = vlaneseq
    %v176 = vshrl.u32 %v175, 7
    %v177 = vsub.s32 %v174, %v176
    %v178 = vrot.slane %v163, %v177
    %v180 = vunpack.c.l.s4 1966171168
    %v181 = vunpack.c.0.s8 %v180
    %v182 = vlaneseq
    %v183 = vshrl.u32 %v182, 7
    %v184 = vsub.s32 %v181, %v183
    %v185 = vrot.slane %v170, %v184
    %v187 = vunpack.c.l.s4 1966171168
    %v188 = vunpack.c.0.s8 %v187
    %v189 = vlaneseq
    %v190 = vshrl.u32 %v189, 7
    %v191 = vsub.s32 %v188, %v190
    %v192 = vrot.slane %v171, %v191
    %v193 = vcombine.high %v178, %v178
    %v194 = vcombine.high %v192, %v192
    %v195 = vcombine.high %v146, %v146
    %v197 = vunpack.c.l.s4 1966171168
    %v198 = vunpack.c.0.s8 %v197
    %v199 = vlaneseq
    %v200 = vshrl.u32 %v199, 7
    %v201 = vsub.s32 %v198, %v200
    %v202 = vrot.slane %v146, %v201
    %v204 = vunpack.c.l.s4 1966171168
    %v205 = vunpack.c.0.s8 %v204
    %v206 = vlaneseq
    %v207 = vshrl.u32 %v206, 7
    %v208 = vsub.s32 %v205, %v207
    %v209 = vrot.slane %v195, %v208
    %v210 = vcombine.high %v202, %v202
    %v212 = vunpack.c.l.s4 1966171168
    %v213 = vunpack.c.0.s8 %v212
    %v214 = vlaneseq
    %v215 = vshrl.u32 %v214, 7
    %v216 = vsub.s32 %v213, %v215
    %v217 = vrot.slane %v202, %v216
    %v219 = vunpack.c.l.s4 1966171168
    %v220 = vunpack.c.0.s8 %v219
    %v221 = vlaneseq
    %v222 = vshrl.u32 %v221, 7
    %v223 = vsub.s32 %v220, %v222
    %v224 = vrot.slane %v209, %v223
    %v226 = vunpack.c.l.s4 1966171168
    %v227 = vunpack.c.0.s8 %v226
    %v228 = vlaneseq
    %v229 = vshrl.u32 %v228, 7
    %v230 = vsub.s32 %v227, %v229
    %v231 = vrot.slane %v210, %v230
    %v232 = vcombine.high %v217, %v217
    %v233 = vcombine.high %v231, %v231
    %v234 = vcombine.high %v147, %v147
    %v236 = vunpack.c.l.s4 1966171168
    %v237 = vunpack.c.0.s8 %v236
    %v238 = vlaneseq
    %v239 = vshrl.u32 %v238, 7
    %v240 = vsub.s32 %v237, %v239
    %v241 = vrot.slane %v147, %v240
    %v243 = vunpack.c.l.s4 1966171168
    %v244 = vunpack.c.0.s8 %v243
    %v245 = vlaneseq
    %v246 = vshrl.u32 %v245, 7
    %v247 = vsub.s32 %v244, %v246
    %v248 = vrot.slane %v234, %v247
    %v249 = vcombine.high %v241, %v241
    %v251 = vunpack.c.l.s4 1966171168
    %v252 = vunpack.c.0.s8 %v251
    %v253 = vlaneseq
    %v254 = vshrl.u32 %v253, 7
    %v255 = vsub.s32 %v252, %v254
    %v256 = vrot.slane %v241, %v255
    %v258 = vunpack.c.l.s4 1966171168
    %v259 = vunpack.c.0.s8 %v258
    %v260 = vlaneseq
    %v261 = vshrl.u32 %v260, 7
    %v262 = vsub.s32 %v259, %v261
    %v263 = vrot.slane %v248, %v262
    %v265 = vunpack.c.l.s4 1966171168
    %v266 = vunpack.c.0.s8 %v265
    %v267 = vlaneseq
    %v268 = vshrl.u32 %v267, 7
    %v269 = vsub.s32 %v266, %v268
    %v270 = vrot.slane %v249, %v269
    %v271 = vcombine.high %v256, %v256
    %v272 = vcombine.high %v270, %v270
    %v273 = vcombine.high %v148, %v148
    %v275 = vunpack.c.l.s4 1966171168
    %v276 = vunpack.c.0.s8 %v275
    %v277 = vlaneseq
    %v278 = vshrl.u32 %v277, 7
    %v279 = vsub.s32 %v276, %v278
    %v280 = vrot.slane %v148, %v279
    %v282 = vunpack.c.l.s4 1966171168
    %v283 = vunpack.c.0.s8 %v282
    %v284 = vlaneseq
    %v285 = vshrl.u32 %v284, 7
    %v286 = vsub.s32 %v283, %v285
    %v287 = vrot.slane %v273, %v286
    %v288 = vcombine.high %v280, %v280
    %v290 = vunpack.c.l.s4 1966171168
    %v291 = vunpack.c.0.s8 %v290
    %v292 = vlaneseq
    %v293 = vshrl.u32 %v292, 7
    %v294 = vsub.s32 %v291, %v293
    %v295 = vrot.slane %v280, %v294
    %v297 = vunpack.c.l.s4 1966171168
    %v298 = vunpack.c.0.s8 %v297
    %v299 = vlaneseq
    %v300 = vshrl.u32 %v299, 7
    %v301 = vsub.s32 %v298, %v300
    %v302 = vrot.slane %v287, %v301
    %v304 = vunpack.c.l.s4 1966171168
    %v305 = vunpack.c.0.s8 %v304
    %v306 = vlaneseq
    %v307 = vshrl.u32 %v306, 7
    %v308 = vsub.s32 %v305, %v307
    %v309 = vrot.slane %v288, %v308
    %v310 = vcombine.high %v295, %v295
    %v311 = vcombine.high %v309, %v309
    %v312 = vcombine.low %v178, %v192
    %v313 = vcombine.low %v193, %v194
    %v314 = vcombine.low %v185, %v217
    %v315 = vcombine.low %v231, %v232
    %v317 = vunpack.c.l.s4 1966171168
    %v318 = vunpack.c.0.s8 %v317
    %v319 = vlaneseq
    %v320 = vshrl.u32 %v319, 7
    %v321 = vsub.s32 %v318, %v320
    %v322 = vrot.slane %v312, %v321
    %v324 = vunpack.c.l.s4 1966171168
    %v325 = vunpack.c.0.s8 %v324
    %v326 = vlaneseq
    %v327 = vshrl.u32 %v326, 7
    %v328 = vsub.s32 %v325, %v327
    %v329 = vrot.slane %v313, %v328
    %v331 = vunpack.c.l.s4 1966171168
    %v332 = vunpack.c.0.s8 %v331
    %v333 = vlaneseq
    %v334 = vshrl.u32 %v333, 7
    %v335 = vsub.s32 %v332, %v334
    %v336 = vrot.slane %v314, %v335
    %v338 = vunpack.c.l.s4 1966171168
    %v339 = vunpack.c.0.s8 %v338
    %v340 = vlaneseq
    %v341 = vshrl.u32 %v340, 7
    %v342 = vsub.s32 %v339, %v341
    %v343 = vrot.slane %v315, %v342
    %v344 = vcombine.low %v322, %v329
    %v345 = vcombine.low %v336, %v343
    %v347 = vunpack.c.l.s4 1966171168
    %v348 = vunpack.c.0.s8 %v347
    %v349 = vlaneseq
    %v350 = vshrl.u32 %v349, 7
    %v351 = vsub.s32 %v348, %v350
    %v352 = vrot.slane %v344, %v351
    %v354 = vunpack.c.l.s4 1966171168
    %v355 = vunpack.c.0.s8 %v354
    %v356 = vlaneseq
    %v357 = vshrl.u32 %v356, 7
    %v358 = vsub.s32 %v355, %v357
    %v359 = vrot.slane %v345, %v358
    %v360 = vcombine.low %v352, %v359
    %v361 = vcombine.low %v233, %v224
    %v362 = vcombine.low %v256, %v270
    %v363 = vcombine.low %v271, %v272
    %v364 = vcombine.low %v263, %v295
    %v366 = vunpack.c.l.s4 1966171168
    %v367 = vunpack.c.0.s8 %v366
    %v368 = vlaneseq
    %v369 = vshrl.u32 %v368, 7
    %v370 = vsub.s32 %v367, %v369
    %v371 = vrot.slane %v361, %v370
    %v373 = vunpack.c.l.s4 1966171168
    %v374 = vunpack.c.0.s8 %v373
    %v375 = vlaneseq
    %v376 = vshrl.u32 %v375, 7
    %v377 = vsub.s32 %v374, %v376
    %v378 = vrot.slane %v362, %v377
    %v380 = vunpack.c.l.s4 1966171168
    %v381 = vunpack.c.0.s8 %v380
    %v382 = vlaneseq
    %v383 = vshrl.u32 %v382, 7
    %v384 = vsub.s32 %v381, %v383
    %v385 = vrot.slane %v363, %v384
    %v387 = vunpack.c.l.s4 1966171168
    %v388 = vunpack.c.0.s8 %v387
    %v389 = vlaneseq
    %v390 = vshrl.u32 %v389, 7
    %v391 = vsub.s32 %v388, %v390
    %v392 = vrot.slane %v364, %v391
    %v393 = vcombine.low %v371, %v378
    %v394 = vcombine.low %v385, %v392
    %v396 = vunpack.c.l.s4 1966171168
    %v397 = vunpack.c.0.s8 %v396
    %v398 = vlaneseq
    %v399 = vshrl.u32 %v398, 7
    %v400 = vsub.s32 %v397, %v399
    %v401 = vrot.slane %v393, %v400
    %v403 = vunpack.c.l.s4 1966171168
    %v404 = vunpack.c.0.s8 %v403
    %v405 = vlaneseq
    %v406 = vshrl.u32 %v405, 7
    %v407 = vsub.s32 %v404, %v406
    %v408 = vrot.slane %v394, %v407
    %v409 = vcombine.low %v401, %v408
    %v410 = vcombine.low %v309, %v310
    %v411 = vcombine.low %v311, %v302
    %v413 = vunpack.c.l.s4 1966171168
    %v414 = vunpack.c.0.s8 %v413
    %v415 = vlaneseq
    %v416 = vshrl.u32 %v415, 7
    %v417 = vsub.s32 %v414, %v416
    %v418 = vrot.slane %v410, %v417
    %v420 = vunpack.c.l.s4 1966171168
    %v421 = vunpack.c.0.s8 %v420
    %v422 = vlaneseq
    %v423 = vshrl.u32 %v422, 7
    %v424 = vsub.s32 %v421, %v423
    %v425 = vrot.slane %v411, %v424
    %v426 = vcombine.low %v418, %v425
    %v428 = vunpack.c.l.s4 1966171168
    %v429 = vunpack.c.0.s8 %v428
    %v430 = vlaneseq
    %v431 = vshrl.u32 %v430, 7
    %v432 = vsub.s32 %v429, %v431
    %v433 = vrot.slane %v426, %v432
    %v437 = vunpack.c.l.b16 %v149
    %v438 = vunpack.c.l.b16 %v150
    %v439 = vunpack.c.l.b16 %v151
    %v440 = vpack.c.b16 %v438, %v437
    %v441 = vpack.c.b16 %v439, %v439
    %vm443 = vcmask 171008
    %v445 = vsel %vm443, %v360, 0
    %v448 = vsel %vm443, %v409, 0
    %v451 = vsel %vm443, %v433, 0
    %vm453 = vcmask 1041408
    %vm454 = vcmask 1042432
    %v455 = vsel %vm453, 4294967295, 65535
    %v456 = vsel %vm454, %v455, 0
    %v458 = vand.u32 %v441, %v456
    %460 = vmatprep.subr.bf16.mxu0 0
    %461 = vmatpush1.bf16.msra.mxu0 0
    %462 = vmatprep.subr.bf16.mxu0 0
    %463 = vmatpush1.bf16.msra.mxu0 0
    %464 = vmatprep.subr.bf16.mxu0 0
    %465 = vmatpush1.bf16.msra.mxu0 0
    %466 = vmatprep.subr.bf16.mxu0 0
    %467 = vmatpush1.bf16.msra.mxu0 0
    %468 = vmatprep.subr.bf16.mxu0 0
    %469 = vmatpush1.bf16.msra.mxu0 0
    %470 = vmatprep.subr.bf16.mxu0 0
    %471 = vmatpush1.bf16.msra.mxu0 0
    %472 = vmatprep.subr.bf16.mxu0 0
    %473 = vmatpush1.bf16.msra.mxu0 %v458
    %474 = vmatprep.subr.bf16.mxu0 0
    %475 = vmatpush1.bf16.msra.mxu0 %v440
    %476 = vmatprep.subr.bf16.mxu0 0
    %477 = vmatpush2.bf16.msra.mxu0 0
    %478 = vmatprep.subr.bf16.mxu0 0
    %479 = vmatpush2.bf16.msra.mxu0 0
    %480 = vmatprep.subr.bf16.mxu0 0
    %481 = vmatpush2.bf16.msra.mxu0 0
    %482 = vmatprep.subr.bf16.mxu0 0
    %483 = vmatpush2.bf16.msra.mxu0 0
    %484 = vmatprep.subr.bf16.mxu0 0
    %485 = vmatpush2.bf16.msra.mxu0 0
    %486 = vmatprep.subr.bf16.mxu0 0
    %487 = vmatpush2.bf16.msra.mxu0 0
    %488 = vmatprep.subr.bf16.mxu0 0
    %489 = vmatpush2.bf16.msra.mxu0 0
    %490 = vmatprep.subr.bf16.mxu0 0
    %491 = vmatpush2.bf16.msra.mxu0 0
    %492 = vmatprep.mubr.bf16.mxu0 0
    %493 = vmatmul.mubr.bf16.gmra.mxu0 %v445
    %v494 = vpop.f32.mrf.mxu0
    %v495 = vadd.f32 0.0, %v494
    %v496 = vpop.f32.mrf.mxu0
    %v497 = vpop.f32.mrf.mxu0
    %v498 = vadd.f32 0.0, %v497
    %v499 = vpop.f32.mrf.mxu0
    %500 = vmatprep.mubr.bf16.mxu0 0
    %501 = vmatmul.mubr.bf16.gmra.mxu0 %v448
    %v502 = vpop.f32.mrf.mxu0
    %v503 = vadd.f32 0.0, %v502
    %v504 = vpop.f32.mrf.mxu0
    %v505 = vpop.f32.mrf.mxu0
    %v506 = vadd.f32 0.0, %v505
    %v507 = vpop.f32.mrf.mxu0
    %508 = vmatprep.mubr.bf16.mxu0 0
    %509 = vmatmul.mubr.bf16.gmra.mxu0 %v451
    %v510 = vpop.f32.mrf.mxu0
    %v511 = vadd.f32 0.0, %v510
    %v512 = vpop.f32.mrf.mxu0
    %v513 = vpop.f32.mrf.mxu0
    %v514 = vpop.f32.mrf.mxu0
    %515 = vdwg.mxu0
    %v521 = vcombine.high %v495, %v495
    %v523 = vunpack.c.l.s4 1983009808
    %v524 = vunpack.c.0.s8 %v523
    %v525 = vlaneseq
    %v526 = vshrl.u32 %v525, 7
    %v527 = vsub.s32 %v524, %v526
    %v528 = vrot.slane %v495, %v527
    %v530 = vunpack.c.l.s4 1983009808
    %v531 = vunpack.c.0.s8 %v530
    %v532 = vlaneseq
    %v533 = vshrl.u32 %v532, 7
    %v534 = vsub.s32 %v531, %v533
    %v535 = vrot.slane %v521, %v534
    %v536 = vcombine.high %v528, %v528
    %v537 = vcombine.high %v535, %v535
    %v538 = vcombine.high %v498, %v498
    %v540 = vunpack.c.l.s4 1983009808
    %v541 = vunpack.c.0.s8 %v540
    %v542 = vlaneseq
    %v543 = vshrl.u32 %v542, 7
    %v544 = vsub.s32 %v541, %v543
    %v545 = vrot.slane %v498, %v544
    %v547 = vunpack.c.l.s4 1983009808
    %v548 = vunpack.c.0.s8 %v547
    %v549 = vlaneseq
    %v550 = vshrl.u32 %v549, 7
    %v551 = vsub.s32 %v548, %v550
    %v552 = vrot.slane %v538, %v551
    %v553 = vcombine.high %v545, %v545
    %v554 = vcombine.high %v552, %v552
    %v555 = vcombine.high %v503, %v503
    %v557 = vunpack.c.l.s4 1983009808
    %v558 = vunpack.c.0.s8 %v557
    %v559 = vlaneseq
    %v560 = vshrl.u32 %v559, 7
    %v561 = vsub.s32 %v558, %v560
    %v562 = vrot.slane %v503, %v561
    %v564 = vunpack.c.l.s4 1983009808
    %v565 = vunpack.c.0.s8 %v564
    %v566 = vlaneseq
    %v567 = vshrl.u32 %v566, 7
    %v568 = vsub.s32 %v565, %v567
    %v569 = vrot.slane %v555, %v568
    %v570 = vcombine.high %v562, %v562
    %v571 = vcombine.high %v569, %v569
    %v572 = vcombine.high %v506, %v506
    %v574 = vunpack.c.l.s4 1983009808
    %v575 = vunpack.c.0.s8 %v574
    %v576 = vlaneseq
    %v577 = vshrl.u32 %v576, 7
    %v578 = vsub.s32 %v575, %v577
    %v579 = vrot.slane %v506, %v578
    %v581 = vunpack.c.l.s4 1983009808
    %v582 = vunpack.c.0.s8 %v581
    %v583 = vlaneseq
    %v584 = vshrl.u32 %v583, 7
    %v585 = vsub.s32 %v582, %v584
    %v586 = vrot.slane %v572, %v585
    %v587 = vcombine.high %v579, %v579
    %v588 = vcombine.high %v586, %v586
    %v589 = vcombine.high %v511, %v511
    %v591 = vunpack.c.l.s4 1983009808
    %v592 = vunpack.c.0.s8 %v591
    %v593 = vlaneseq
    %v594 = vshrl.u32 %v593, 7
    %v595 = vsub.s32 %v592, %v594
    %v596 = vrot.slane %v511, %v595
    %v598 = vunpack.c.l.s4 1983009808
    %v599 = vunpack.c.0.s8 %v598
    %v600 = vlaneseq
    %v601 = vshrl.u32 %v600, 7
    %v602 = vsub.s32 %v599, %v601
    %v603 = vrot.slane %v589, %v602
    %v604 = vcombine.high %v596, %v596
    %v605 = vcombine.high %v603, %v603
    %v606 = vcombine.low %v528, %v536
    %v607 = vcombine.low %v535, %v537
    %v609 = vunpack.c.l.s4 1983009808
    %v610 = vunpack.c.0.s8 %v609
    %v611 = vlaneseq
    %v612 = vshrl.u32 %v611, 7
    %v613 = vsub.s32 %v610, %v612
    %v614 = vrot.slane %v606, %v613
    %v616 = vunpack.c.l.s4 1983009808
    %v617 = vunpack.c.0.s8 %v616
    %v618 = vlaneseq
    %v619 = vshrl.u32 %v618, 7
    %v620 = vsub.s32 %v617, %v619
    %v621 = vrot.slane %v607, %v620
    %v622 = vcombine.low %v614, %v621
    %v624 = vunpack.c.l.s4 1983009808
    %v625 = vunpack.c.0.s8 %v624
    %v626 = vlaneseq
    %v627 = vshrl.u32 %v626, 7
    %v628 = vsub.s32 %v625, %v627
    %v629 = vrot.slane %v545, %v628
    %v630 = vcombine.low %v553, %v552
    %v631 = vcombine.low %v554, %v562
    %v633 = vunpack.c.l.s4 1983009808
    %v634 = vunpack.c.0.s8 %v633
    %v635 = vlaneseq
    %v636 = vshrl.u32 %v635, 7
    %v637 = vsub.s32 %v634, %v636
    %v638 = vrot.slane %v630, %v637
    %v640 = vunpack.c.l.s4 1983009808
    %v641 = vunpack.c.0.s8 %v640
    %v642 = vlaneseq
    %v643 = vshrl.u32 %v642, 7
    %v644 = vsub.s32 %v641, %v643
    %v645 = vrot.slane %v631, %v644
    %v646 = vcombine.low %v638, %v645
    %v648 = vunpack.c.l.s4 1983009808
    %v649 = vunpack.c.0.s8 %v648
    %v650 = vlaneseq
    %v651 = vshrl.u32 %v650, 7
    %v652 = vsub.s32 %v649, %v651
    %v653 = vrot.slane %v570, %v652
    %v654 = vcombine.low %v569, %v571
    %v655 = vcombine.low %v579, %v587
    %v657 = vunpack.c.l.s4 1983009808
    %v658 = vunpack.c.0.s8 %v657
    %v659 = vlaneseq
    %v660 = vshrl.u32 %v659, 7
    %v661 = vsub.s32 %v658, %v660
    %v662 = vrot.slane %v654, %v661
    %v664 = vunpack.c.l.s4 1983009808
    %v665 = vunpack.c.0.s8 %v664
    %v666 = vlaneseq
    %v667 = vshrl.u32 %v666, 7
    %v668 = vsub.s32 %v665, %v667
    %v669 = vrot.slane %v655, %v668
    %v670 = vcombine.low %v662, %v669
    %v672 = vunpack.c.l.s4 1983009808
    %v673 = vunpack.c.0.s8 %v672
    %v674 = vlaneseq
    %v675 = vshrl.u32 %v674, 7
    %v676 = vsub.s32 %v673, %v675
    %v677 = vrot.slane %v586, %v676
    %v678 = vcombine.low %v588, %v596
    %v679 = vcombine.low %v604, %v603
    %v681 = vunpack.c.l.s4 1983009808
    %v682 = vunpack.c.0.s8 %v681
    %v683 = vlaneseq
    %v684 = vshrl.u32 %v683, 7
    %v685 = vsub.s32 %v682, %v684
    %v686 = vrot.slane %v678, %v685
    %v688 = vunpack.c.l.s4 1983009808
    %v689 = vunpack.c.0.s8 %v688
    %v690 = vlaneseq
    %v691 = vshrl.u32 %v690, 7
    %v692 = vsub.s32 %v689, %v691
    %v693 = vrot.slane %v679, %v692
    %v694 = vcombine.low %v686, %v693
    %v696 = vunpack.c.l.s4 1983009808
    %v697 = vunpack.c.0.s8 %v696
    %v698 = vlaneseq
    %v699 = vshrl.u32 %v698, 7
    %v700 = vsub.s32 %v697, %v699
    %v701 = vrot.slane %v605, %v700
    %v710 = vpack.c.bf16 %v629, %v622
    %v711 = vpack.c.bf16 %v653, %v646
    %v712 = vpack.c.bf16 %v677, %v670
    %v713 = vpack.c.bf16 %v701, %v694
    %v714 = vld [vmem:[%s2] sm:$0xf]
    %v715 = vld [vmem:[%s2 + $0x4] sm:$0xf]
    %v716 = vld [vmem:[%s2 + $0x8] sm:$0xf]
    %v717 = vld [vmem:[%s2 + $0xc] sm:$0xf]
    %s718 = scalar_lea.vmem %s2, 16
    %v719 = vld [vmem:[%s718] sm:$0xf]
    %v720 = vld [vmem:[%s718 + $0x4] sm:$0xf]
    %v721 = vld [vmem:[%s718 + $0x8] sm:$0xf]
    %v722 = vld [vmem:[%s718 + $0xc] sm:$0xf]
    %v727 = vunpack.c.l.b16 %v710
    %v728 = vunpack.c.h.b16 %v710
    %v729 = vunpack.c.l.b16 %v711
    %v730 = vunpack.c.h.b16 %v711
    %v731 = vunpack.c.l.b16 %v712
    %v732 = vunpack.c.h.b16 %v712
    %v733 = vunpack.c.l.b16 %v713
    %v734 = vunpack.c.h.b16 %v713
    %v735 = vpack.c.b16 %v727, %v727
    %v736 = vpack.c.b16 %v728, %v728
    %v737 = vpack.c.b16 %v729, %v729
    %v738 = vpack.c.b16 %v730, %v730
    %v739 = vpack.c.b16 %v731, %v731
    %v740 = vpack.c.b16 %v732, %v732
    %v741 = vpack.c.b16 %v733, %v733
    %v742 = vpack.c.b16 %v734, %v734
    %vm743 = vsmask.f32 3328
    %vm744 = vsmask.f32 7440
    %vm745 = vmor %vm743, %vm744
    %v747 = vshrl.u32 %v735, 16
    %v749 = vrot.slane %v747, 4
    %v750 = vshll.u32 %v735, 16
    %v752 = vrot.slane %v750, 5
    %v753 = vor.u32 %v749, %v752
    %v754 = vrot.slane %v753, 4
    %v756 = vshll.u32 %v736, 16
    %v758 = vrot.slane %v756, 5
    %v759 = vsel %vm745, %v754, %v758
    %v761 = vshrl.u32 %v737, 16
    %v763 = vrot.slane %v761, 4
    %v764 = vshll.u32 %v737, 16
    %v766 = vrot.slane %v764, 5
    %v767 = vor.u32 %v763, %v766
    %v768 = vrot.slane %v767, 4
    %v770 = vshll.u32 %v738, 16
    %v772 = vrot.slane %v770, 5
    %v773 = vsel %vm745, %v768, %v772
    %v775 = vshrl.u32 %v739, 16
    %v777 = vrot.slane %v775, 4
    %v778 = vshll.u32 %v739, 16
    %v780 = vrot.slane %v778, 5
    %v781 = vor.u32 %v777, %v780
    %v782 = vrot.slane %v781, 4
    %v784 = vshll.u32 %v740, 16
    %v786 = vrot.slane %v784, 5
    %v787 = vsel %vm745, %v782, %v786
    %v789 = vshrl.u32 %v741, 16
    %v791 = vrot.slane %v789, 4
    %v792 = vshll.u32 %v741, 16
    %v794 = vrot.slane %v792, 5
    %v795 = vor.u32 %v791, %v794
    %v796 = vrot.slane %v795, 4
    %v798 = vshll.u32 %v742, 16
    %v800 = vrot.slane %v798, 5
    %v801 = vsel %vm745, %v796, %v800
    %v802 = vunpack.c.l.b16 %v759
    %v803 = vunpack.c.l.b16 %v773
    %v804 = vunpack.c.l.b16 %v787
    %v805 = vunpack.c.l.b16 %v801
    %v806 = vpack.c.b16 %v803, %v802
    %v807 = vpack.c.b16 %v805, %v804
    %v812 = vunpack.c.l.b16 %v719
    %v813 = vunpack.c.l.b16 %v720
    %v814 = vunpack.c.l.b16 %v721
    %v815 = vunpack.c.l.b16 %v722
    %v816 = vpack.c.b16 %v813, %v812
    %v817 = vpack.c.b16 %v815, %v814
    %vm820 = vcmask 261120
    %v822 = vsel %vm820, %v806, 0
    %v825 = vsel %vm820, %v807, 0
    %827 = vmatprep.subr.bf16.mxu0 0
    %828 = vmatpush1.bf16.msra.mxu0 0
    %829 = vmatprep.subr.bf16.mxu0 0
    %830 = vmatpush1.bf16.msra.mxu0 0
    %831 = vmatprep.subr.bf16.mxu0 0
    %832 = vmatpush1.bf16.msra.mxu0 0
    %833 = vmatprep.subr.bf16.mxu0 0
    %834 = vmatpush1.bf16.msra.mxu0 0
    %835 = vmatprep.subr.bf16.mxu0 0
    %836 = vmatpush1.bf16.msra.mxu0 0
    %837 = vmatprep.subr.bf16.mxu0 0
    %838 = vmatpush1.bf16.msra.mxu0 0
    %839 = vmatprep.subr.bf16.mxu0 0
    %840 = vmatpush1.bf16.msra.mxu0 %v817
    %841 = vmatprep.subr.bf16.mxu0 0
    %842 = vmatpush1.bf16.msra.mxu0 %v816
    %843 = vmatprep.subr.bf16.mxu0 0
    %844 = vmatpush2.bf16.msra.mxu0 0
    %845 = vmatprep.subr.bf16.mxu0 0
    %846 = vmatpush2.bf16.msra.mxu0 0
    %847 = vmatprep.subr.bf16.mxu0 0
    %848 = vmatpush2.bf16.msra.mxu0 0
    %849 = vmatprep.subr.bf16.mxu0 0
    %850 = vmatpush2.bf16.msra.mxu0 0
    %851 = vmatprep.subr.bf16.mxu0 0
    %852 = vmatpush2.bf16.msra.mxu0 0
    %853 = vmatprep.subr.bf16.mxu0 0
    %854 = vmatpush2.bf16.msra.mxu0 0
    %855 = vmatprep.subr.bf16.mxu0 0
    %856 = vmatpush2.bf16.msra.mxu0 0
    %857 = vmatprep.subr.bf16.mxu0 0
    %858 = vmatpush2.bf16.msra.mxu0 0
    %859 = vmatprep.mubr.bf16.mxu0 0
    %860 = vmatmul.mubr.bf16.gmra.mxu0 %v822
    %v861 = vpop.f32.mrf.mxu0
    %v862 = vadd.f32 0.0, %v861
    %v863 = vpop.f32.mrf.mxu0
    %v864 = vpop.f32.mrf.mxu0
    %v865 = vadd.f32 0.0, %v864
    %v866 = vpop.f32.mrf.mxu0
    %867 = vmatprep.mubr.bf16.mxu0 0
    %868 = vmatmul.mubr.bf16.gmra.mxu0 %v825
    %v869 = vpop.f32.mrf.mxu0
    %v870 = vadd.f32 0.0, %v869
    %v871 = vpop.f32.mrf.mxu0
    %v872 = vpop.f32.mrf.mxu0
    %v873 = vadd.f32 0.0, %v872
    %v874 = vpop.f32.mrf.mxu0
    %875 = vdwg.mxu0
    %v876 = vpack.c.b16 %v729, %v727
    %v877 = vpack.c.b16 %v733, %v731
    %v882 = vunpack.c.l.b16 %v714
    %v883 = vunpack.c.l.b16 %v715
    %v884 = vunpack.c.l.b16 %v716
    %v885 = vunpack.c.l.b16 %v717
    %v886 = vpack.c.b16 %v883, %v882
    %v887 = vpack.c.b16 %v885, %v884
    %v891 = vsel %vm820, %v876, 0
    %v894 = vsel %vm820, %v877, 0
    %896 = vmatprep.subr.bf16.mxu0 0
    %897 = vmatpush1.bf16.msra.mxu0 0
    %898 = vmatprep.subr.bf16.mxu0 0
    %899 = vmatpush1.bf16.msra.mxu0 0
    %900 = vmatprep.subr.bf16.mxu0 0
    %901 = vmatpush1.bf16.msra.mxu0 0
    %902 = vmatprep.subr.bf16.mxu0 0
    %903 = vmatpush1.bf16.msra.mxu0 0
    %904 = vmatprep.subr.bf16.mxu0 0
    %905 = vmatpush1.bf16.msra.mxu0 0
    %906 = vmatprep.subr.bf16.mxu0 0
    %907 = vmatpush1.bf16.msra.mxu0 0
    %908 = vmatprep.subr.bf16.mxu0 0
    %909 = vmatpush1.bf16.msra.mxu0 %v887
    %910 = vmatprep.subr.bf16.mxu0 0
    %911 = vmatpush1.bf16.msra.mxu0 %v886
    %912 = vmatprep.subr.bf16.mxu0 0
    %913 = vmatpush2.bf16.msra.mxu0 0
    %914 = vmatprep.subr.bf16.mxu0 0
    %915 = vmatpush2.bf16.msra.mxu0 0
    %916 = vmatprep.subr.bf16.mxu0 0
    %917 = vmatpush2.bf16.msra.mxu0 0
    %918 = vmatprep.subr.bf16.mxu0 0
    %919 = vmatpush2.bf16.msra.mxu0 0
    %920 = vmatprep.subr.bf16.mxu0 0
    %921 = vmatpush2.bf16.msra.mxu0 0
    %922 = vmatprep.subr.bf16.mxu0 0
    %923 = vmatpush2.bf16.msra.mxu0 0
    %924 = vmatprep.subr.bf16.mxu0 0
    %925 = vmatpush2.bf16.msra.mxu0 0
    %926 = vmatprep.subr.bf16.mxu0 0
    %927 = vmatpush2.bf16.msra.mxu0 0
    %928 = vmatprep.mubr.bf16.mxu0 0
    %929 = vmatmul.mubr.bf16.gmra.mxu0 %v891
    %v930 = vpop.f32.mrf.mxu0
    %v931 = vadd.f32 %v862, %v930
    %v932 = vpop.f32.mrf.mxu0
    %v933 = vpop.f32.mrf.mxu0
    %v934 = vadd.f32 %v865, %v933
    %v935 = vpop.f32.mrf.mxu0
    %936 = vmatprep.mubr.bf16.mxu0 0
    %937 = vmatmul.mubr.bf16.gmra.mxu0 %v894
    %v938 = vpop.f32.mrf.mxu0
    %v939 = vadd.f32 %v870, %v938
    %v940 = vpop.f32.mrf.mxu0
    %v941 = vpop.f32.mrf.mxu0
    %v942 = vadd.f32 %v873, %v941
    %v943 = vpop.f32.mrf.mxu0
    %944 = vdwg.mxu0
    %s945 = scalar_lea.vmem %s2, 32
    %v946 = vld [vmem:[%s945] sm:$0xf]
    %v947 = vld [vmem:[%s945 + $0x4] sm:$0xf]
    %v948 = vld [vmem:[%s945 + $0x8] sm:$0xf]
    %v949 = vld [vmem:[%s945 + $0xc] sm:$0xf]
    %vm950 = vcmask 1042432
    %vm951 = vcmask 1046532
    %vm952 = vmor %vm950, %vm951
    %v953 = vrot.slane %v735, 5
    %v954 = vrot.slane %v953, 4
    %v955 = vrot.slane %v736, 5
    %v956 = vsel %vm952, %v954, %v955
    %v957 = vrot.slane %v737, 5
    %v958 = vrot.slane %v957, 4
    %v959 = vrot.slane %v738, 5
    %v960 = vsel %vm952, %v958, %v959
    %v961 = vrot.slane %v739, 5
    %v962 = vrot.slane %v961, 4
    %v963 = vrot.slane %v740, 5
    %v964 = vsel %vm952, %v962, %v963
    %v965 = vrot.slane %v741, 5
    %v966 = vrot.slane %v965, 4
    %v967 = vrot.slane %v742, 5
    %v968 = vsel %vm952, %v966, %v967
    %v969 = vunpack.c.l.b16 %v956
    %v970 = vunpack.c.l.b16 %v960
    %v971 = vunpack.c.l.b16 %v964
    %v972 = vunpack.c.l.b16 %v968
    %v973 = vpack.c.b16 %v970, %v969
    %v974 = vpack.c.b16 %v972, %v971
    %v979 = vunpack.c.l.b16 %v946
    %v980 = vunpack.c.l.b16 %v947
    %v981 = vunpack.c.l.b16 %v948
    %v982 = vunpack.c.l.b16 %v949
    %v983 = vpack.c.b16 %v980, %v979
    %v984 = vpack.c.b16 %v982, %v981
    %v988 = vsel %vm820, %v973, 0
    %v991 = vsel %vm820, %v974, 0
    %993 = vmatprep.subr.bf16.mxu0 0
    %994 = vmatpush1.bf16.msra.mxu0 0
    %995 = vmatprep.subr.bf16.mxu0 0
    %996 = vmatpush1.bf16.msra.mxu0 0
    %997 = vmatprep.subr.bf16.mxu0 0
    %998 = vmatpush1.bf16.msra.mxu0 0
    %999 = vmatprep.subr.bf16.mxu0 0
    %1000 = vmatpush1.bf16.msra.mxu0 0
    %1001 = vmatprep.subr.bf16.mxu0 0
    %1002 = vmatpush1.bf16.msra.mxu0 0
    %1003 = vmatprep.subr.bf16.mxu0 0
    %1004 = vmatpush1.bf16.msra.mxu0 0
    %1005 = vmatprep.subr.bf16.mxu0 0
    %1006 = vmatpush1.bf16.msra.mxu0 %v984
    %1007 = vmatprep.subr.bf16.mxu0 0
    %1008 = vmatpush1.bf16.msra.mxu0 %v983
    %1009 = vmatprep.subr.bf16.mxu0 0
    %1010 = vmatpush2.bf16.msra.mxu0 0
    %1011 = vmatprep.subr.bf16.mxu0 0
    %1012 = vmatpush2.bf16.msra.mxu0 0
    %1013 = vmatprep.subr.bf16.mxu0 0
    %1014 = vmatpush2.bf16.msra.mxu0 0
    %1015 = vmatprep.subr.bf16.mxu0 0
    %1016 = vmatpush2.bf16.msra.mxu0 0
    %1017 = vmatprep.subr.bf16.mxu0 0
    %1018 = vmatpush2.bf16.msra.mxu0 0
    %1019 = vmatprep.subr.bf16.mxu0 0
    %1020 = vmatpush2.bf16.msra.mxu0 0
    %1021 = vmatprep.subr.bf16.mxu0 0
    %1022 = vmatpush2.bf16.msra.mxu0 0
    %1023 = vmatprep.subr.bf16.mxu0 0
    %1024 = vmatpush2.bf16.msra.mxu0 0
    %1025 = vmatprep.mubr.bf16.mxu0 0
    %1026 = vmatmul.mubr.bf16.gmra.mxu0 %v988
    %v1027 = vpop.f32.mrf.mxu0
    %v1028 = vadd.f32 0.0, %v1027
    %v1029 = vpop.f32.mrf.mxu0
    %v1030 = vpop.f32.mrf.mxu0
    %v1031 = vadd.f32 0.0, %v1030
    %v1032 = vpop.f32.mrf.mxu0
    %1033 = vmatprep.mubr.bf16.mxu0 0
    %1034 = vmatmul.mubr.bf16.gmra.mxu0 %v991
    %v1035 = vpop.f32.mrf.mxu0
    %v1036 = vadd.f32 0.0, %v1035
    %v1037 = vpop.f32.mrf.mxu0
    %v1038 = vpop.f32.mrf.mxu0
    %v1039 = vadd.f32 0.0, %v1038
    %v1040 = vpop.f32.mrf.mxu0
    %1041 = vdwg.mxu0
    %v1042 = vadd.f32 %v931, %v1028
    %v1043 = vadd.f32 %v934, %v1031
    %v1044 = vadd.f32 %v939, %v1036
    %v1045 = vadd.f32 %v942, %v1039
    %v1046 = vld [vmem:[%s3] sm:$0xff]
    %v1047 = vadd.f32 %v1042, %v1046
    %v1048 = vadd.f32 %v1043, %v1046
    %v1049 = vadd.f32 %v1044, %v1046
    %v1050 = vadd.f32 %v1045, %v1046
    %v1051 = vrot.slane %v1047, 4
    %v1052 = vmax.f32 %v1047, %v1051
    %v1053 = vrot.slane %v1052, 2
    %v1054 = vmax.f32 %v1052, %v1053
    %v1055 = vrot.slane %v1054, 1
    %v1056 = vmax.f32 %v1054, %v1055
    %v1057 = vrot.slane %v1048, 4
    %v1058 = vmax.f32 %v1048, %v1057
    %v1059 = vrot.slane %v1058, 2
    %v1060 = vmax.f32 %v1058, %v1059
    %v1061 = vrot.slane %v1060, 1
    %v1062 = vmax.f32 %v1060, %v1061
    %v1063 = vrot.slane %v1049, 4
    %v1064 = vmax.f32 %v1049, %v1063
    %v1065 = vrot.slane %v1064, 2
    %v1066 = vmax.f32 %v1064, %v1065
    %v1067 = vrot.slane %v1066, 1
    %v1068 = vmax.f32 %v1066, %v1067
    %v1069 = vrot.slane %v1050, 4
    %v1070 = vmax.f32 %v1050, %v1069
    %v1071 = vrot.slane %v1070, 2
    %v1072 = vmax.f32 %v1070, %v1071
    %v1073 = vrot.slane %v1072, 1
    %v1074 = vmax.f32 %v1072, %v1073
    %v1075 = vld [vmem:[%s4] sm:$0x1]
    %v1077 = vlaneseq
    %v1078 = vshrl.u32 %v1077, 7
    %v1079 = vsub.s32 0, %v1078
    %v1080 = vrot.slane %v1075, %v1079
    %v1082 = vadd.f32 %v1056, %v1080
    %v1083 = vadd.f32 %v1062, %v1080
    %v1084 = vadd.f32 %v1068, %v1080
    %v1085 = vadd.f32 %v1074, %v1080
    %v1086 = vmax.f32 %v1082, 0.0
    %v1087 = vmax.f32 %v1083, 0.0
    %v1088 = vmax.f32 %v1084, 0.0
    %v1089 = vmax.f32 %v1085, 0.0
    %v1090 = vld [vmem:[#allocation2] sm:$0xff]
    %v1091 = vld [vmem:[#allocation2 + $0x8] sm:$0xff]
    %v1092 = vld [vmem:[#allocation2 + $0x10] sm:$0xff]
    %v1093 = vld [vmem:[#allocation2 + $0x18] sm:$0xff]
    %v1094 = vld [vmem:[#allocation2 + $0x20] sm:$0xff]
    %v1095 = vld [vmem:[#allocation2 + $0x28] sm:$0xff]
    %v1096 = vld [vmem:[#allocation2 + $0x30] sm:$0xff]
    %v1097 = vld [vmem:[#allocation2 + $0x38] sm:$0xff]
    %v1098 = vld [vmem:[#allocation2 + $0x40] sm:$0xff]
    %v1099 = vld [vmem:[#allocation2 + $0x48] sm:$0xff]
    %v1100 = vld [vmem:[#allocation2 + $0x50] sm:$0xff]
    %v1101 = vld [vmem:[#allocation2 + $0x58] sm:$0xff]
    %v1102 = vld [vmem:[#allocation2 + $0x60] sm:$0xff]
    %v1103 = vld [vmem:[#allocation2 + $0x68] sm:$0xff]
    %v1104 = vld [vmem:[#allocation2 + $0x70] sm:$0xff]
    %v1105 = vld [vmem:[#allocation2 + $0x78] sm:$0xff]
    %v1106 = vld [vmem:[%s6] sm:$0x1]
    %v1108 = vlaneseq
    %v1109 = vshrl.u32 %v1108, 7
    %v1110 = vsub.s32 0, %v1109
    %v1111 = vrot.slane %v1106, %v1110
    %v1117 = vrot.slane %v1087, 7
    %vm1118 = vcmask 1041409
    %v1119 = vsel %vm1118, %v1117, %v1086
    %v1120 = vrot.slane %v1088, 6
    %vm1121 = vcmask 1042434
    %v1122 = vsel %vm1121, %v1120, %v1119
    %v1123 = vrot.slane %v1089, 5
    %vm1124 = vcmask 1043459
    %v1125 = vsel %vm1124, %v1123, %v1122
    %1127 = vmatprep.subr.mxu0 0.0
    %1128 = vmatpush1.msra.mxu0 %v1105
    %1129 = vmatprep.subr.mxu0 0.0
    %1130 = vmatpush1.msra.mxu0 %v1104
    %1131 = vmatprep.subr.mxu0 0.0
    %1132 = vmatpush1.msra.mxu0 %v1103
    %1133 = vmatprep.subr.mxu0 0.0
    %1134 = vmatpush1.msra.mxu0 %v1102
    %1135 = vmatprep.subr.mxu0 0.0
    %1136 = vmatpush1.msra.mxu0 %v1101
    %1137 = vmatprep.subr.mxu0 0.0
    %1138 = vmatpush1.msra.mxu0 %v1100
    %1139 = vmatprep.subr.mxu0 0.0
    %1140 = vmatpush1.msra.mxu0 %v1099
    %1141 = vmatprep.subr.mxu0 0.0
    %1142 = vmatpush1.msra.mxu0 %v1098
    %1143 = vmatprep.subr.mxu0 0.0
    %1144 = vmatpush1.msra.mxu0 %v1097
    %1145 = vmatprep.subr.mxu0 0.0
    %1146 = vmatpush1.msra.mxu0 %v1096
    %1147 = vmatprep.subr.mxu0 0.0
    %1148 = vmatpush1.msra.mxu0 %v1095
    %1149 = vmatprep.subr.mxu0 0.0
    %1150 = vmatpush1.msra.mxu0 %v1094
    %1151 = vmatprep.subr.mxu0 0.0
    %1152 = vmatpush1.msra.mxu0 %v1093
    %1153 = vmatprep.subr.mxu0 0.0
    %1154 = vmatpush1.msra.mxu0 %v1092
    %1155 = vmatprep.subr.mxu0 0.0
    %1156 = vmatpush1.msra.mxu0 %v1091
    %1157 = vmatprep.subr.mxu0 0.0
    %1158 = vmatpush1.msra.mxu0 %v1090
    %1159 = vmatprep.subr.mxu0 0.0
    %1160 = vmatpush2.msra.mxu0 0.0
    %1161 = vmatprep.subr.mxu0 0.0
    %1162 = vmatpush2.msra.mxu0 0.0
    %1163 = vmatprep.subr.mxu0 0.0
    %1164 = vmatpush2.msra.mxu0 0.0
    %1165 = vmatprep.subr.mxu0 0.0
    %1166 = vmatpush2.msra.mxu0 0.0
    %1167 = vmatprep.subr.mxu0 0.0
    %1168 = vmatpush2.msra.mxu0 0.0
    %1169 = vmatprep.subr.mxu0 0.0
    %1170 = vmatpush2.msra.mxu0 0.0
    %1171 = vmatprep.subr.mxu0 0.0
    %1172 = vmatpush2.msra.mxu0 0.0
    %1173 = vmatprep.subr.mxu0 0.0
    %1174 = vmatpush2.msra.mxu0 0.0
    %1175 = vmatprep.subr.mxu0 0.0
    %1176 = vmatpush2.msra.mxu0 0.0
    %1177 = vmatprep.subr.mxu0 0.0
    %1178 = vmatpush2.msra.mxu0 0.0
    %1179 = vmatprep.subr.mxu0 0.0
    %1180 = vmatpush2.msra.mxu0 0.0
    %1181 = vmatprep.subr.mxu0 0.0
    %1182 = vmatpush2.msra.mxu0 0.0
    %1183 = vmatprep.subr.mxu0 0.0
    %1184 = vmatpush2.msra.mxu0 0.0
    %1185 = vmatprep.subr.mxu0 0.0
    %1186 = vmatpush2.msra.mxu0 0.0
    %1187 = vmatprep.subr.mxu0 0.0
    %1188 = vmatpush2.msra.mxu0 0.0
    %1189 = vmatprep.subr.mxu0 0.0
    %1190 = vmatpush2.msra.mxu0 0.0
    %1191 = vmatprep.mubr.f32.mxu0 0.0
    %1192 = vmatmul.mubr.f32.gmra.mxu0 %v1125
    %v1193 = vpop.f32.mrf.mxu0
    %v1194 = vadd.f32 %v1111, %v1193
    %v1195 = vpop.f32.mrf.mxu0
    %1196 = vdwg.mxu0
    %v1197 = vmax.f32 %v1194, 0.0
    %v1198 = vld [vmem:[#allocation5] sm:$0xff]
    %v1199 = vld [vmem:[#allocation5 + $0x8] sm:$0xff]
    %v1200 = vld [vmem:[#allocation5 + $0x10] sm:$0xff]
    %v1201 = vld [vmem:[#allocation5 + $0x18] sm:$0xff]
    %v1202 = vld [vmem:[#allocation5 + $0x20] sm:$0xff]
    %v1203 = vld [vmem:[#allocation5 + $0x28] sm:$0xff]
    %v1204 = vld [vmem:[#allocation5 + $0x30] sm:$0xff]
    %v1205 = vld [vmem:[#allocation5 + $0x38] sm:$0xff]
    %v1206 = vld [vmem:[#allocation5 + $0x40] sm:$0xff]
    %v1207 = vld [vmem:[#allocation5 + $0x48] sm:$0xff]
    %v1208 = vld [vmem:[#allocation5 + $0x50] sm:$0xff]
    %v1209 = vld [vmem:[#allocation5 + $0x58] sm:$0xff]
    %v1210 = vld [vmem:[#allocation5 + $0x60] sm:$0xff]
    %v1211 = vld [vmem:[#allocation5 + $0x68] sm:$0xff]
    %v1212 = vld [vmem:[#allocation5 + $0x70] sm:$0xff]
    %v1213 = vld [vmem:[#allocation5 + $0x78] sm:$0xff]
    %v1214 = vld [vmem:[%s8] sm:$0x1]
    %v1216 = vlaneseq
    %v1217 = vshrl.u32 %v1216, 7
    %v1218 = vsub.s32 0, %v1217
    %v1219 = vrot.slane %v1214, %v1218
    %1221 = vmatprep.subr.mxu0 0.0
    %1222 = vmatpush1.msra.mxu0 %v1213
    %1223 = vmatprep.subr.mxu0 0.0
    %1224 = vmatpush1.msra.mxu0 %v1212
    %1225 = vmatprep.subr.mxu0 0.0
    %1226 = vmatpush1.msra.mxu0 %v1211
    %1227 = vmatprep.subr.mxu0 0.0
    %1228 = vmatpush1.msra.mxu0 %v1210
    %1229 = vmatprep.subr.mxu0 0.0
    %1230 = vmatpush1.msra.mxu0 %v1209
    %1231 = vmatprep.subr.mxu0 0.0
    %1232 = vmatpush1.msra.mxu0 %v1208
    %1233 = vmatprep.subr.mxu0 0.0
    %1234 = vmatpush1.msra.mxu0 %v1207
    %1235 = vmatprep.subr.mxu0 0.0
    %1236 = vmatpush1.msra.mxu0 %v1206
    %1237 = vmatprep.subr.mxu0 0.0
    %1238 = vmatpush1.msra.mxu0 %v1205
    %1239 = vmatprep.subr.mxu0 0.0
    %1240 = vmatpush1.msra.mxu0 %v1204
    %1241 = vmatprep.subr.mxu0 0.0
    %1242 = vmatpush1.msra.mxu0 %v1203
    %1243 = vmatprep.subr.mxu0 0.0
    %1244 = vmatpush1.msra.mxu0 %v1202
    %1245 = vmatprep.subr.mxu0 0.0
    %1246 = vmatpush1.msra.mxu0 %v1201
    %1247 = vmatprep.subr.mxu0 0.0
    %1248 = vmatpush1.msra.mxu0 %v1200
    %1249 = vmatprep.subr.mxu0 0.0
    %1250 = vmatpush1.msra.mxu0 %v1199
    %1251 = vmatprep.subr.mxu0 0.0
    %1252 = vmatpush1.msra.mxu0 %v1198
    %1253 = vmatprep.subr.mxu0 0.0
    %1254 = vmatpush2.msra.mxu0 0.0
    %1255 = vmatprep.subr.mxu0 0.0
    %1256 = vmatpush2.msra.mxu0 0.0
    %1257 = vmatprep.subr.mxu0 0.0
    %1258 = vmatpush2.msra.mxu0 0.0
    %1259 = vmatprep.subr.mxu0 0.0
    %1260 = vmatpush2.msra.mxu0 0.0
    %1261 = vmatprep.subr.mxu0 0.0
    %1262 = vmatpush2.msra.mxu0 0.0
    %1263 = vmatprep.subr.mxu0 0.0
    %1264 = vmatpush2.msra.mxu0 0.0
    %1265 = vmatprep.subr.mxu0 0.0
    %1266 = vmatpush2.msra.mxu0 0.0
    %1267 = vmatprep.subr.mxu0 0.0
    %1268 = vmatpush2.msra.mxu0 0.0
    %1269 = vmatprep.subr.mxu0 0.0
    %1270 = vmatpush2.msra.mxu0 0.0
    %1271 = vmatprep.subr.mxu0 0.0
    %1272 = vmatpush2.msra.mxu0 0.0
    %1273 = vmatprep.subr.mxu0 0.0
    %1274 = vmatpush2.msra.mxu0 0.0
    %1275 = vmatprep.subr.mxu0 0.0
    %1276 = vmatpush2.msra.mxu0 0.0
    %1277 = vmatprep.subr.mxu0 0.0
    %1278 = vmatpush2.msra.mxu0 0.0
    %1279 = vmatprep.subr.mxu0 0.0
    %1280 = vmatpush2.msra.mxu0 0.0
    %1281 = vmatprep.subr.mxu0 0.0
    %1282 = vmatpush2.msra.mxu0 0.0
    %1283 = vmatprep.subr.mxu0 0.0
    %1284 = vmatpush2.msra.mxu0 0.0
    %1285 = vmatprep.mubr.f32.mxu0 0.0
    %1286 = vmatmul.mubr.f32.gmra.mxu0 %v1125
    %v1287 = vpop.f32.mrf.mxu0
    %v1288 = vadd.f32 %v1219, %v1287
    %v1289 = vpop.f32.mrf.mxu0
    %1290 = vdwg.mxu0
    %v1291 = vxor.u32 %v1288, 2147483648
    %v1292 = vmul.f32 %v1291, 1.442695
    %v1293 = vpow.pop %v1292
    %v1294 = vadd.f32 %v1293, 1.0
    %v1295 = vrcp.pop %v1294
    %v1296 = vmul.f32 1.0, %v1295
    %v1297 = vmul.f32 %v1296, %v1197
    %v1298 = vsub.f32 1.0, %v1296
    %v1299 = vmul.f32 %v1298, %v1125
    %v1300 = vadd.f32 %v1297, %v1299
    %1301 = vst [vmem:[#allocation8] sm:$0xf] %v1300
    %v1302 = vld [vmem:[#allocation7] sm:$0xff]
    %v1303 = vld [vmem:[#allocation7 + $0x8] sm:$0xff]
    %v1304 = vld [vmem:[#allocation7 + $0x10] sm:$0xff]
    %v1305 = vld [vmem:[#allocation7 + $0x18] sm:$0xff]
    %v1306 = vld [vmem:[#allocation7 + $0x20] sm:$0xff]
    %v1307 = vld [vmem:[#allocation7 + $0x28] sm:$0xff]
    %v1308 = vld [vmem:[#allocation7 + $0x30] sm:$0xff]
    %v1309 = vld [vmem:[#allocation7 + $0x38] sm:$0xff]
    %v1310 = vld [vmem:[#allocation7 + $0x40] sm:$0xff]
    %v1311 = vld [vmem:[#allocation7 + $0x48] sm:$0xff]
    %v1312 = vld [vmem:[#allocation7 + $0x50] sm:$0xff]
    %v1313 = vld [vmem:[#allocation7 + $0x58] sm:$0xff]
    %v1314 = vld [vmem:[#allocation7 + $0x60] sm:$0xff]
    %v1315 = vld [vmem:[#allocation7 + $0x68] sm:$0xff]
    %v1316 = vld [vmem:[#allocation7 + $0x70] sm:$0xff]
    %v1317 = vld [vmem:[#allocation7 + $0x78] sm:$0xff]
    %v1318 = vld [vmem:[%s10] sm:$0x1]
    %v1320 = vlaneseq
    %v1321 = vshrl.u32 %v1320, 7
    %v1322 = vsub.s32 0, %v1321
    %v1323 = vrot.slane %v1318, %v1322
    %1325 = vmatprep.subr.mxu0 0.0
    %1326 = vmatpush1.msra.mxu0 %v1317
    %1327 = vmatprep.subr.mxu0 0.0
    %1328 = vmatpush1.msra.mxu0 %v1316
    %1329 = vmatprep.subr.mxu0 0.0
    %1330 = vmatpush1.msra.mxu0 %v1315
    %1331 = vmatprep.subr.mxu0 0.0
    %1332 = vmatpush1.msra.mxu0 %v1314
    %1333 = vmatprep.subr.mxu0 0.0
    %1334 = vmatpush1.msra.mxu0 %v1313
    %1335 = vmatprep.subr.mxu0 0.0
    %1336 = vmatpush1.msra.mxu0 %v1312
    %1337 = vmatprep.subr.mxu0 0.0
    %1338 = vmatpush1.msra.mxu0 %v1311
    %1339 = vmatprep.subr.mxu0 0.0
    %1340 = vmatpush1.msra.mxu0 %v1310
    %1341 = vmatprep.subr.mxu0 0.0
    %1342 = vmatpush1.msra.mxu0 %v1309
    %1343 = vmatprep.subr.mxu0 0.0
    %1344 = vmatpush1.msra.mxu0 %v1308
    %1345 = vmatprep.subr.mxu0 0.0
    %1346 = vmatpush1.msra.mxu0 %v1307
    %1347 = vmatprep.subr.mxu0 0.0
    %1348 = vmatpush1.msra.mxu0 %v1306
    %1349 = vmatprep.subr.mxu0 0.0
    %1350 = vmatpush1.msra.mxu0 %v1305
    %1351 = vmatprep.subr.mxu0 0.0
    %1352 = vmatpush1.msra.mxu0 %v1304
    %1353 = vmatprep.subr.mxu0 0.0
    %1354 = vmatpush1.msra.mxu0 %v1303
    %1355 = vmatprep.subr.mxu0 0.0
    %1356 = vmatpush1.msra.mxu0 %v1302
    %1357 = vmatprep.subr.mxu0 0.0
    %1358 = vmatpush2.msra.mxu0 0.0
    %1359 = vmatprep.subr.mxu0 0.0
    %1360 = vmatpush2.msra.mxu0 0.0
    %1361 = vmatprep.subr.mxu0 0.0
    %1362 = vmatpush2.msra.mxu0 0.0
    %1363 = vmatprep.subr.mxu0 0.0
    %1364 = vmatpush2.msra.mxu0 0.0
    %1365 = vmatprep.subr.mxu0 0.0
    %1366 = vmatpush2.msra.mxu0 0.0
    %1367 = vmatprep.subr.mxu0 0.0
    %1368 = vmatpush2.msra.mxu0 0.0
    %1369 = vmatprep.subr.mxu0 0.0
    %1370 = vmatpush2.msra.mxu0 0.0
    %1371 = vmatprep.subr.mxu0 0.0
    %1372 = vmatpush2.msra.mxu0 0.0
    %1373 = vmatprep.subr.mxu0 0.0
    %1374 = vmatpush2.msra.mxu0 0.0
    %1375 = vmatprep.subr.mxu0 0.0
    %1376 = vmatpush2.msra.mxu0 0.0
    %1377 = vmatprep.subr.mxu0 0.0
    %1378 = vmatpush2.msra.mxu0 0.0
    %1379 = vmatprep.subr.mxu0 0.0
    %1380 = vmatpush2.msra.mxu0 0.0
    %1381 = vmatprep.subr.mxu0 0.0
    %1382 = vmatpush2.msra.mxu0 0.0
    %1383 = vmatprep.subr.mxu0 0.0
    %1384 = vmatpush2.msra.mxu0 0.0
    %1385 = vmatprep.subr.mxu0 0.0
    %1386 = vmatpush2.msra.mxu0 0.0
    %1387 = vmatprep.subr.mxu0 0.0
    %1388 = vmatpush2.msra.mxu0 0.0
    %1389 = vmatprep.mubr.f32.mxu0 0.0
    %1390 = vmatmul.mubr.f32.gmra.mxu0 %v1300
    %v1391 = vpop.f32.mrf.mxu0
    %v1392 = vadd.f32 %v1323, %v1391
    %v1393 = vpop.f32.mrf.mxu0
    %1394 = vdwg.mxu0
    %1395 = vst [vmem:[%s13] sm:$0xf] %v1392
    %v1396 = vld [vmem:[%s11] sm:$0x1]
    %v1398 = vlaneseq
    %v1399 = vshrl.u32 %v1398, 7
    %v1400 = vsub.s32 0, %v1399
    %v1401 = vrot.slane %v1396, %v1400
    %v1403 = vadd.f32 %v1392, %v1401
    %vm1404 = vcmask 1043456
    %v1405 = vsel %vm1404, %v1403, -inf
    %1406 = vmax.xlane.f32.xlu0 %v1405
    %v1407 = vpop.xlane.xlu0 %1406
    %v1408 = vsub.f32 %v1403, %v1407
    %v1409 = vmul.f32 %v1408, 1.442695
    %v1410 = vpow.pop %v1409
    %v1411 = vsel %vm1404, %v1410, 0.0
    %1412 = vadd.xlane.f32.xlu0 %v1411
    %v1413 = vpop.xlane.xlu0 %1412
    %v1414 = vrcp.pop %v1413
    %v1415 = vmul.f32 %v1410, %v1414
    %1416 = vst [vmem:[%s14] sm:$0xf] %v1415
    // Predicated region
    $region62: #{discriminator_forward.1} parent=1 // pred_check
      _
    $region63: #{discriminator_forward.1} parent=1 // pred_check_branch
      %1418 = sbr.rel (0) target = $region65
    $region64: #{discriminator_forward.1} parent=1 // pred_region
      %s1420 = ssub.s32 64, 64
      %1421 = vsyncadd [#allocation4], %s1420
      %s1423 = sshll.u32 [#allocation8], 4
      %s1424 = int_to_ptr.vmem [resolvable:$true] %s1423
      %1426 = dma.vmem_to_hbm [thread:$0]  %s1424, 64, %s12, [#allocation4]
    $region65: #{discriminator_forward.1} parent=1 // pred_fallthru
      _
    // Predicated region
    $region66: #{discriminator_forward.1} parent=1 // pred_check
      _
    $region67: #{discriminator_forward.1} parent=1 // pred_check_branch
      %1428 = sbr.rel (0) target = $region69
    $region68: #{discriminator_forward.1} parent=1 // pred_region
      _
    $region69: #{discriminator_forward.1} parent=1 // pred_fallthru
      _
    // Predicated region
    $region70: #{discriminator_forward.1} parent=1 // pred_check
      _
    $region71: #{discriminator_forward.1} parent=1 // pred_check_branch
      %1430 = sbr.rel (0) target = $region73
    $region72: #{discriminator_forward.1} parent=1 // pred_region
      _
    $region73: #{discriminator_forward.1} parent=1 // pred_fallthru
      _
    // Predicated region
    $region74: #{discriminator_forward.1} parent=1 // pred_check
      _
    $region75: #{discriminator_forward.1} parent=1 // pred_check_branch
      %1432 = sbr.rel (0) target = $region77
    $region76: #{discriminator_forward.1} parent=1 // pred_region
      %1433 = dma.done [#allocation4], 64
    $region77: #{discriminator_forward.1} parent=1 // pred_fallthru
      _
    // Predicated region
    $region78: #{discriminator_forward.1} parent=1 // pred_check
      _
    $region79: #{discriminator_forward.1} parent=1 // pred_check_branch
      %1435 = sbr.rel (0) target = $region81
    $region80: #{discriminator_forward.1} parent=1 // pred_region
      _
    $region81: #{discriminator_forward.1} parent=1 // pred_fallthru
      _
    // Predicated region
    $region82: #{discriminator_forward.1} parent=1 // pred_check
      _
    $region83: #{discriminator_forward.1} parent=1 // pred_check_branch
      %1437 = sbr.rel (0) target = $region85
    $region84: #{discriminator_forward.1} parent=1 // pred_region
      _
    $region85: #{discriminator_forward.1} parent=1 // pred_fallthru
      _
    %1438 = vsyncpa [#allocation3], 1
    %1439 = vsyncpa [#allocation6], 1
    %1440 = vsyncpa [#allocation4], 1

</llo_original>
